<compile_context>
chip_gen: v5e
topology: v5e:2x2
jax: 0.10.0
libtpu: 0.0.40
codegen_flags: <defaults>
</compile_context>

<pallas_src>
import jax
import jax.numpy as jnp
from jax.experimental import pallas as pl
from jax.experimental.pallas import tpu as pltpu

H = 200     # logical hidden size of the module
HP = 256    # hidden size padded to a multiple of the 128-lane vreg width
OP = 128    # padded lane width of the action / value head outputs
OUT = HP + 2 * OP   # lane-dense per-step output slab: [hidden | probs | value]

# ---- column offsets inside the packed weight slab (input dim = HP everywhere) ----
_WX_OFF   = 0                    # (HP, 3*HP)  x-side GRU gates [r|z|n]
_WH_OFF   = _WX_OFF + 3 * HP     # (HP, 3*HP)  h-side GRU gates [r|z|n]
_WHD1_OFF = _WH_OFF + 3 * HP     # (HP, 2*HP)  [a1 | v1]
_WA2_OFF  = _WHD1_OFF + 2 * HP   # (HP, HP)
_WV2_OFF  = _WA2_OFF + HP        # (HP, HP)
_WAO_OFF  = _WV2_OFF + HP        # (HP, OP)    action head (cols >= A are zero)
_WVO_OFF  = _WAO_OFF + OP        # (HP, OP)    value head  (col 0 is real)
_WTOT     = _WVO_OFF + OP        # 2816  (all offsets / widths multiples of 128)

# ---- offsets inside the packed bias slab (single (1, _BTOT) f32 row) ----
_BS_OFF   = 0                    # (HP,)    shared-layer bias
_BX_OFF   = _BS_OFF + HP         # (3*HP,)  [bir+bhr | biz+bhz | bin]
_BHN_OFF  = _BX_OFF + 3 * HP     # (HP,)    bhn (stays inside r*(...))
_BHD1_OFF = _BHN_OFF + HP        # (2*HP,)  [ba1 | bv1]
_BA2_OFF  = _BHD1_OFF + 2 * HP   # (HP,)
_BV2_OFF  = _BA2_OFF + HP        # (HP,)
_BAO_OFF  = _BV2_OFF + HP        # (OP,)    cols >= A hold -1e30 -> exp == 0 in softmax
_BVO_OFF  = _BAO_OFF + OP        # (OP,)
_BTOT     = _BVO_OFF + OP        # 2560


def _policy_kernel(state_ref, h0_ref, ws_ref, wbig_ref, bias_ref, out_ref, h_ref):
    f32 = jnp.float32
    bf16 = jnp.bfloat16
    t = pl.program_id(1)

    # at the first timestep of each batch block, (re)load the initial hidden state
    @pl.when(t == 0)
    def _():
        h_ref[...] = h0_ref[...]

    def dot(a, b):
        # bf16 x bf16 MXU matmul with f32 accumulation
        return jnp.dot(a.astype(bf16), b, preferred_element_type=f32)

    def bias(off, width):
        # load each bias chunk right next to its consumer (short live ranges)
        return bias_ref[:, off:off + width]

    # shared: x = relu(state @ Ws + bs)      (pad lanes of x stay exactly 0)
    x = jnp.maximum(dot(state_ref[...], ws_ref[...]) + bias(_BS_OFF, HP), 0.0)

    # ---- single-step GRU, gates fused into two matmuls (PyTorch r, z, n order) ----
    h = h_ref[...]                                             # (bm, HP), pad lanes 0
    gx = dot(x, wbig_ref[:, _WX_OFF:_WX_OFF + 3 * HP]) + bias(_BX_OFF, 3 * HP)
    gh = dot(h, wbig_ref[:, _WH_OFF:_WH_OFF + 3 * HP])
    r = jax.nn.sigmoid(gx[:, 0:HP] + gh[:, 0:HP])
    z = jax.nn.sigmoid(gx[:, HP:2 * HP] + gh[:, HP:2 * HP])
    n = jnp.tanh(gx[:, 2 * HP:3 * HP]
                 + r * (gh[:, 2 * HP:3 * HP] + bias(_BHN_OFF, HP)))
    h_new = (1.0 - z) * n + z * h                              # pad lanes stay 0
    h_ref[...] = h_new                                         # carried to next timestep

    # ---- first actor / critic layers fused into one matmul on h_new ----
    hd1 = jnp.maximum(dot(h_new, wbig_ref[:, _WHD1_OFF:_WHD1_OFF + 2 * HP])
                      + bias(_BHD1_OFF, 2 * HP), 0.0)
    a1 = hd1[:, 0:HP]
    v1 = hd1[:, HP:2 * HP]

    a2 = jnp.maximum(dot(a1, wbig_ref[:, _WA2_OFF:_WA2_OFF + HP])
                     + bias(_BA2_OFF, HP), 0.0)
    v2 = jnp.maximum(dot(v1, wbig_ref[:, _WV2_OFF:_WV2_OFF + HP])
                     + bias(_BV2_OFF, HP), 0.0)

    # ---- fused action/value heads: one (2*bm, HP) x (HP, 2*OP) MXU push ----
    bm = a2.shape[0]
    heads = dot(jnp.concatenate([a2, v2], axis=0),
                wbig_ref[:, _WAO_OFF:_WAO_OFF + 2 * OP])
    logits = heads[0:bm, 0:OP] + bias(_BAO_OFF, OP)            # pad lanes get -1e30
    value = heads[bm:2 * bm, OP:2 * OP] + bias(_BVO_OFF, OP)   # only lane 0 is real

    # stable softmax over 128 lanes (padded action lanes -> exactly 0 probability)
    logits = logits - jnp.max(logits, axis=1, keepdims=True)
    e = jnp.exp(logits)
    probs = e * pl.reciprocal(jnp.sum(e, axis=1, keepdims=True), approx=True)

    # direct lane-aligned slice stores into the output slab (no concat copy)
    out_ref[:, 0:HP] = h_new
    out_ref[:, HP:HP + OP] = probs
    out_ref[:, HP + OP:HP + 2 * OP] = value


def policy_rollout(params, states, hidden0, action_space_size, *, batch_block=None):
    """Apply policy.forward to T consecutive timesteps inside a single pallas_call.

    states: (T, B, S) f32, hidden0: (1, B, H) f32.
    Returns (actions (T, B, A), values (T, B, 1), hiddens (T, B, H))."""
    T, B, S = states.shape
    A = action_space_size
    assert A <= OP
    bm = B if batch_block is None else batch_block
    assert B % bm == 0 and (bm == B or bm % 8 == 0)

    states = states.astype(jnp.float32)
    h0p = jnp.zeros((B, HP), jnp.float32).at[:, :H].set(hidden0.reshape(B, H))

    ws, wbig, bias = params["ws"], params["wbig"], params["bias"]
    weight_bytes = sum(int(a.size) * a.dtype.itemsize for a in (ws, wbig, bias))
    step_bytes = B * (S + OUT) * 4
    flops_step = 2 * B * (S * HP            # shared layer
                          + 2 * HP * 3 * HP  # fused GRU gate matmuls
                          + HP * 2 * HP      # fused a1|v1
                          + 2 * HP * HP      # a2, v2
                          + HP * 2 * OP)     # fused action|value heads
    trans_step = B * (3 * HP + OP + 1)

    out = pl.pallas_call(
        _policy_kernel,
        out_shape=jax.ShapeDtypeStruct((T, B, OUT), jnp.float32),
        grid=(pl.cdiv(B, bm), T),   # (batch blocks: parallel, timesteps: arbitrary)
        in_specs=[
            pl.BlockSpec((None, bm, S), lambda b, t: (t, b, 0)),   # per-step state
            pl.BlockSpec((bm, HP), lambda b, t: (b, 0)),           # initial hidden
            pl.BlockSpec(ws.shape, lambda b, t: (0, 0)),           # VMEM-resident weights
            pl.BlockSpec(wbig.shape, lambda b, t: (0, 0)),
            pl.BlockSpec(bias.shape, lambda b, t: (0, 0)),
        ],
        out_specs=pl.BlockSpec((None, bm, OUT), lambda b, t: (t, b, 0)),
        scratch_shapes=[pltpu.VMEM((bm, HP), jnp.float32)],        # hidden carry
        compiler_params=pltpu.CompilerParams(
            dimension_semantics=("parallel", "arbitrary")),
        cost_estimate=pl.CostEstimate(
            flops=T * flops_step,
            transcendentals=T * trans_step,
            bytes_accessed=weight_bytes + T * step_bytes),
    )(states, h0p, ws, wbig, bias)

    actions = out[:, :, HP:HP + A]
    values = out[:, :, HP + OP:HP + OP + 1]
    hiddens = out[:, :, :H]
    return actions, values, hiddens


def policy_forward(params, state, hidden, action_space_size):
    """Exact equivalent of the module's forward: state (B,S), hidden (1,B,H)."""
    actions, values, hiddens = policy_rollout(params, state[None], hidden,
                                              action_space_size)
    return actions[0], values[0], hiddens[-1][None]


def init_params(key, state_space_size, action_space_size):
    """Synthetic init mirroring the module's shapes/init; returns packed/padded slabs."""
    S, A = state_space_size, action_space_size
    assert A <= OP
    f32 = jnp.float32

    def linear(k, fan_in, fan_out):
        kw, kb = jax.random.split(k)
        # module's weight_init: normal(0, sqrt(2/(fan_in+fan_out))), stored as weight.T
        std = jnp.sqrt(2.0 / (fan_in + fan_out)).astype(f32)
        w = std * jax.random.normal(kw, (fan_in, fan_out), f32)
        bound = 1.0 / jnp.sqrt(jnp.float32(fan_in))        # PyTorch default bias init
        bvec = jax.random.uniform(kb, (fan_out,), f32, -bound, bound)
        return w, bvec

    keys = jax.random.split(key, 8)
    ws_raw, bs = linear(keys[0], S, H)

    # GRU params: PyTorch default U(-1/sqrt(H), 1/sqrt(H))
    bound = 1.0 / jnp.sqrt(jnp.float32(H))
    gnames = ["wxr", "wxz", "wxn", "whr", "whz", "whn",
              "bir", "biz", "bin", "bhr", "bhz", "bhn"]
    g = {}
    for name, gk in zip(gnames, jax.random.split(keys[1], len(gnames))):
        shape = (H, H) if name.startswith("w") else (H,)
        g[name] = jax.random.uniform(gk, shape, f32, -bound, bound)

    wa1, ba1 = linear(keys[2], H, H)
    wa2, ba2 = linear(keys[3], H, H)
    wao, bao = linear(keys[4], H, A)
    wv1, bv1 = linear(keys[5], H, H)
    wv2, bv2 = linear(keys[6], H, H)
    wvo, bvo = linear(keys[7], H, 1)

    def pad_w(w, rows=HP, cols=HP):
        return jnp.zeros((rows, cols), f32).at[: w.shape[0], : w.shape[1]].set(w)

    def pad_b(bvec, width=HP, fill=0.0):
        return jnp.full((width,), fill, f32).at[: bvec.shape[0]].set(bvec)

    # one weight slab (HP, _WTOT); every segment is 128-lane aligned
    wbig = jnp.concatenate(
        [pad_w(g["wxr"]), pad_w(g["wxz"]), pad_w(g["wxn"]),        # _WX_OFF
         pad_w(g["whr"]), pad_w(g["whz"]), pad_w(g["whn"]),        # _WH_OFF
         pad_w(wa1), pad_w(wv1),                                   # _WHD1_OFF
         pad_w(wa2), pad_w(wv2),                                   # _WA2_OFF, _WV2_OFF
         pad_w(wao, HP, OP), pad_w(wvo, HP, OP)],                  # _WAO_OFF, _WVO_OFF
        axis=1)
    assert wbig.shape == (HP, _WTOT)

    # one bias slab (1, _BTOT); GRU r/z biases pre-summed; action pads get -1e30
    bias = jnp.concatenate(
        [pad_b(bs),                                                            # _BS_OFF
         pad_b(g["bir"] + g["bhr"]), pad_b(g["biz"] + g["bhz"]), pad_b(g["bin"]),  # _BX_OFF
         pad_b(g["bhn"]),                                                      # _BHN_OFF
         pad_b(ba1), pad_b(bv1),                                               # _BHD1_OFF
         pad_b(ba2), pad_b(bv2),                                               # _BA2_OFF, _BV2_OFF
         pad_b(bao, OP, -1e30),                                                # _BAO_OFF
         pad_b(bvo, OP, 0.0)])[None, :]                                        # _BVO_OFF
    assert bias.shape == (1, _BTOT)

    return {
        "ws": pad_w(ws_raw, S, HP).astype(jnp.bfloat16),
        "wbig": wbig.astype(jnp.bfloat16),
        "bias": bias,
    }


if __name__ == "__main__":
    STATE_SPACE = 16
    ACTION_SPACE = 8
    BATCH = 2
    T = 8

    key = jax.random.PRNGKey(0)
    kp, ks, kh = jax.random.split(key, 3)

    params = init_params(kp, STATE_SPACE, ACTION_SPACE)
    states = jax.random.normal(ks, (T, BATCH, STATE_SPACE), jnp.float32)
    hidden0 = jax.random.normal(kh, (1, BATCH, H), jnp.float32)

    # ---- single-step call (exact semantics of policy.forward) ----
    actions, value, hidden1 = policy_forward(params, states[0], hidden0, ACTION_SPACE)
    jax.block_until_ready((actions, value, hidden1))
    assert actions.shape == (BATCH, ACTION_SPACE)
    assert value.shape == (BATCH, 1)
    assert hidden1.shape == (1, BATCH, H)
    assert bool(jnp.all(jnp.abs(jnp.sum(actions, axis=1) - 1.0) < 1e-2))

    # ---- T-step rollout in one pallas_call (weights stay VMEM-resident) ----
    acts_T, vals_T, hids_T = policy_rollout(params, states, hidden0, ACTION_SPACE)
    jax.block_until_ready((acts_T, vals_T, hids_T))
    assert acts_T.shape == (T, BATCH, ACTION_SPACE)
    assert vals_T.shape == (T, BATCH, 1)
    assert hids_T.shape == (T, BATCH, H)
    assert bool(jnp.all(jnp.abs(jnp.sum(acts_T, axis=2) - 1.0) < 1e-2))
    # step 0 of the rollout must match the single-step call
    assert bool(jnp.allclose(acts_T[0], actions, atol=1e-5, rtol=1e-5))
    assert bool(jnp.allclose(vals_T[0], value, atol=1e-5, rtol=1e-5))
    assert bool(jnp.allclose(hids_T[0], hidden1[0], atol=1e-5, rtol=1e-5))

    print("KERNEL_OK")
</pallas_src>

<mosaic_0001>
module attributes {stable_mosaic.version = 11 : i64} {
  func.func @_policy_kernel(%arg0: i32, %arg1: i32, %arg2: memref<1x2x16xf32, #tpu.memory_space<vmem>>, %arg3: memref<2x256xf32, #tpu.memory_space<vmem>>, %arg4: memref<16x256xbf16, #tpu.memory_space<vmem>>, %arg5: memref<256x2816xbf16, #tpu.memory_space<vmem>>, %arg6: memref<1x2560xf32, #tpu.memory_space<vmem>>, %arg7: memref<1x2x512xf32, #tpu.memory_space<vmem>>, %arg8: memref<2x256xf32, #tpu.memory_space<vmem>>) attributes {dimension_semantics = [#tpu.dimension_semantics<parallel>, #tpu.dimension_semantics<arbitrary>], iteration_bounds = array<i64: 1, 1>, scalar_prefetch = 0 : i64, scratch_operands = 1 : i64, tpu.core_type = #tpu.core_type<tc>, window_params = [{transform_indices = @transform_0, window_bounds = array<i64: 1, 2, 16>}, {transform_indices = @transform_1, window_bounds = array<i64: 2, 256>}, {pipeline_mode = #tpu.pipeline_mode<synchronous>, transform_indices = @transform_2, window_bounds = array<i64: 16, 256>}, {pipeline_mode = #tpu.pipeline_mode<synchronous>, transform_indices = @transform_3, window_bounds = array<i64: 256, 2816>}, {pipeline_mode = #tpu.pipeline_mode<synchronous>, transform_indices = @transform_4, window_bounds = array<i64: 1, 2560>}, {transform_indices = @transform_5, window_bounds = array<i64: 1, 2, 512>}]} {
    %c0_i32 = arith.constant 0 : i32
    %0 = arith.cmpi eq, %arg1, %c0_i32 : i32
    %1 = arith.extui %0 : i1 to i32
    %c0_i32_0 = arith.constant 0 : i32
    %2 = arith.cmpi ne, %1, %c0_i32_0 : i32
    scf.if %2 {
      %c0_50 = arith.constant 0 : index
      %c0_51 = arith.constant 0 : index
      %110 = vector.load %arg3[%c0_50, %c0_51] : memref<2x256xf32, #tpu.memory_space<vmem>>, vector<2x256xf32>
      %c0_52 = arith.constant 0 : index
      %c0_53 = arith.constant 0 : index
      %111 = vector.load %arg8[%c0_52, %c0_53] : memref<2x256xf32, #tpu.memory_space<vmem>>, vector<2x256xf32>
      tpu.vector_store %arg8[%c0_52, %c0_53], %110 {strides = array<i32>} : memref<2x256xf32, #tpu.memory_space<vmem>>, vector<2x256xf32>,
    } else {
    }
    %c0 = arith.constant 0 : index
    %c0_1 = arith.constant 0 : index
    %c0_2 = arith.constant 0 : index
    %3 = vector.load %arg2[%c0, %c0_1, %c0_2] : memref<1x2x16xf32, #tpu.memory_space<vmem>>, vector<1x2x16xf32>
    %4 = vector.shape_cast %3 : vector<1x2x16xf32> to vector<2x16xf32>
    %c0_3 = arith.constant 0 : index
    %c0_4 = arith.constant 0 : index
    %5 = vector.load %arg4[%c0_3, %c0_4] : memref<16x256xbf16, #tpu.memory_space<vmem>>, vector<16x256xbf16>
    %6 = arith.truncf %4 : vector<2x16xf32> to vector<2x16xbf16>
    %cst = arith.constant dense<0.000000e+00> : vector<2x256xf32>
    %7 = tpu.matmul %6, %5, %cst {dimension_numbers = #tpu.dot_dimension_numbers<[1], [0], [0], [1], [0, 0, 1, 1], [], []>} : vector<2x16xbf16>, vector<16x256xbf16>, vector<2x256xf32> -> vector<2x256xf32>
    %c0_5 = arith.constant 0 : index
    %c0_6 = arith.constant 0 : index
    %8 = vector.load %arg6[%c0_5, %c0_6] : memref<1x2560xf32, #tpu.memory_space<vmem>>, vector<1x256xf32>
    %9 = vector.broadcast %8 : vector<1x256xf32> to vector<2x256xf32>
    %10 = arith.addf %7, %9 : vector<2x256xf32>
    %cst_7 = arith.constant 0.000000e+00 : f32
    %11 = vector.broadcast %cst_7 : f32 to vector<2x256xf32>
    %12 = arith.maximumf %10, %11 : vector<2x256xf32>
    %c0_8 = arith.constant 0 : index
    %c0_9 = arith.constant 0 : index
    %13 = vector.load %arg8[%c0_8, %c0_9] : memref<2x256xf32, #tpu.memory_space<vmem>>, vector<2x256xf32>
    %c0_10 = arith.constant 0 : index
    %c0_11 = arith.constant 0 : index
    %14 = vector.load %arg5[%c0_10, %c0_11] : memref<256x2816xbf16, #tpu.memory_space<vmem>>, vector<256x768xbf16>
    %15 = arith.truncf %12 : vector<2x256xf32> to vector<2x256xbf16>
    %cst_12 = arith.constant dense<0.000000e+00> : vector<2x768xf32>
    %16 = tpu.matmul %15, %14, %cst_12 {dimension_numbers = #tpu.dot_dimension_numbers<[1], [0], [0], [1], [0, 0, 1, 1], [], []>} : vector<2x256xbf16>, vector<256x768xbf16>, vector<2x768xf32> -> vector<2x768xf32>
    %c0_13 = arith.constant 0 : index
    %c256 = arith.constant 256 : index
    %17 = vector.load %arg6[%c0_13, %c256] : memref<1x2560xf32, #tpu.memory_space<vmem>>, vector<1x768xf32>
    %18 = vector.broadcast %17 : vector<1x768xf32> to vector<2x768xf32>
    %19 = arith.addf %16, %18 : vector<2x768xf32>
    %c0_14 = arith.constant 0 : index
    %c768 = arith.constant 768 : index
    %20 = vector.load %arg5[%c0_14, %c768] : memref<256x2816xbf16, #tpu.memory_space<vmem>>, vector<256x768xbf16>
    %21 = arith.truncf %13 : vector<2x256xf32> to vector<2x256xbf16>
    %cst_15 = arith.constant dense<0.000000e+00> : vector<2x768xf32>
    %22 = tpu.matmul %21, %20, %cst_15 {dimension_numbers = #tpu.dot_dimension_numbers<[1], [0], [0], [1], [0, 0, 1, 1], [], []>} : vector<2x256xbf16>, vector<256x768xbf16>, vector<2x768xf32> -> vector<2x768xf32>
    %23 = vector.extract_strided_slice %19 {offsets = [0, 0], sizes = [2, 256], strides = [1, 1]} : vector<2x768xf32> to vector<2x256xf32>
    %24 = vector.extract_strided_slice %22 {offsets = [0, 0], sizes = [2, 256], strides = [1, 1]} : vector<2x768xf32> to vector<2x256xf32>
    %25 = arith.addf %23, %24 : vector<2x256xf32>
    %26 = arith.negf %25 : vector<2x256xf32>
    %27 = math.exp %26 : vector<2x256xf32>
    %cst_16 = arith.constant 1.000000e+00 : f32
    %28 = vector.broadcast %cst_16 : f32 to vector<2x256xf32>
    %29 = arith.addf %28, %27 : vector<2x256xf32>
    %30 = arith.divf %28, %29 : vector<2x256xf32>
    %31 = vector.extract_strided_slice %19 {offsets = [0, 256], sizes = [2, 256], strides = [1, 1]} : vector<2x768xf32> to vector<2x256xf32>
    %32 = vector.extract_strided_slice %22 {offsets = [0, 256], sizes = [2, 256], strides = [1, 1]} : vector<2x768xf32> to vector<2x256xf32>
    %33 = arith.addf %31, %32 : vector<2x256xf32>
    %34 = arith.negf %33 : vector<2x256xf32>
    %35 = math.exp %34 : vector<2x256xf32>
    %cst_17 = arith.constant 1.000000e+00 : f32
    %36 = vector.broadcast %cst_17 : f32 to vector<2x256xf32>
    %37 = arith.addf %36, %35 : vector<2x256xf32>
    %38 = arith.divf %36, %37 : vector<2x256xf32>
    %39 = vector.extract_strided_slice %19 {offsets = [0, 512], sizes = [2, 256], strides = [1, 1]} : vector<2x768xf32> to vector<2x256xf32>
    %40 = vector.extract_strided_slice %22 {offsets = [0, 512], sizes = [2, 256], strides = [1, 1]} : vector<2x768xf32> to vector<2x256xf32>
    %c0_18 = arith.constant 0 : index
    %c1024 = arith.constant 1024 : index
    %41 = vector.load %arg6[%c0_18, %c1024] : memref<1x2560xf32, #tpu.memory_space<vmem>>, vector<1x256xf32>
    %42 = vector.broadcast %41 : vector<1x256xf32> to vector<2x256xf32>
    %43 = arith.addf %40, %42 : vector<2x256xf32>
    %44 = arith.mulf %30, %43 : vector<2x256xf32>
    %45 = arith.addf %39, %44 : vector<2x256xf32>
    %46 = math.tanh %45 : vector<2x256xf32>
    %cst_19 = arith.constant 1.000000e+00 : f32
    %47 = vector.broadcast %cst_19 : f32 to vector<2x256xf32>
    %48 = arith.subf %47, %38 : vector<2x256xf32>
    %49 = arith.mulf %48, %46 : vector<2x256xf32>
    %50 = arith.mulf %38, %13 : vector<2x256xf32>
    %51 = arith.addf %49, %50 : vector<2x256xf32>
    %c0_20 = arith.constant 0 : index
    %c0_21 = arith.constant 0 : index
    %52 = vector.load %arg8[%c0_20, %c0_21] : memref<2x256xf32, #tpu.memory_space<vmem>>, vector<2x256xf32>
    tpu.vector_store %arg8[%c0_20, %c0_21], %51 {strides = array<i32>} : memref<2x256xf32, #tpu.memory_space<vmem>>, vector<2x256xf32>,
    %c0_22 = arith.constant 0 : index
    %c1536 = arith.constant 1536 : index
    %53 = vector.load %arg5[%c0_22, %c1536] : memref<256x2816xbf16, #tpu.memory_space<vmem>>, vector<256x512xbf16>
    %54 = arith.truncf %51 : vector<2x256xf32> to vector<2x256xbf16>
    %cst_23 = arith.constant dense<0.000000e+00> : vector<2x512xf32>
    %55 = tpu.matmul %54, %53, %cst_23 {dimension_numbers = #tpu.dot_dimension_numbers<[1], [0], [0], [1], [0, 0, 1, 1], [], []>} : vector<2x256xbf16>, vector<256x512xbf16>, vector<2x512xf32> -> vector<2x512xf32>
    %c0_24 = arith.constant 0 : index
    %c1280 = arith.constant 1280 : index
    %56 = vector.load %arg6[%c0_24, %c1280] : memref<1x2560xf32, #tpu.memory_space<vmem>>, vector<1x512xf32>
    %57 = vector.broadcast %56 : vector<1x512xf32> to vector<2x512xf32>
    %58 = arith.addf %55, %57 : vector<2x512xf32>
    %cst_25 = arith.constant 0.000000e+00 : f32
    %59 = vector.broadcast %cst_25 : f32 to vector<2x512xf32>
    %60 = arith.maximumf %58, %59 : vector<2x512xf32>
    %61 = vector.extract_strided_slice %60 {offsets = [0, 0], sizes = [2, 256], strides = [1, 1]} : vector<2x512xf32> to vector<2x256xf32>
    %62 = vector.extract_strided_slice %60 {offsets = [0, 256], sizes = [2, 256], strides = [1, 1]} : vector<2x512xf32> to vector<2x256xf32>
    %c0_26 = arith.constant 0 : index
    %c2048 = arith.constant 2048 : index
    %63 = vector.load %arg5[%c0_26, %c2048] : memref<256x2816xbf16, #tpu.memory_space<vmem>>, vector<256x256xbf16>
    %64 = arith.truncf %61 : vector<2x256xf32> to vector<2x256xbf16>
    %cst_27 = arith.constant dense<0.000000e+00> : vector<2x256xf32>
    %65 = tpu.matmul %64, %63, %cst_27 {dimension_numbers = #tpu.dot_dimension_numbers<[1], [0], [0], [1], [0, 0, 1, 1], [], []>} : vector<2x256xbf16>, vector<256x256xbf16>, vector<2x256xf32> -> vector<2x256xf32>
    %c0_28 = arith.constant 0 : index
    %c1792 = arith.constant 1792 : index
    %66 = vector.load %arg6[%c0_28, %c1792] : memref<1x2560xf32, #tpu.memory_space<vmem>>, vector<1x256xf32>
    %67 = vector.broadcast %66 : vector<1x256xf32> to vector<2x256xf32>
    %68 = arith.addf %65, %67 : vector<2x256xf32>
    %cst_29 = arith.constant 0.000000e+00 : f32
    %69 = vector.broadcast %cst_29 : f32 to vector<2x256xf32>
    %70 = arith.maximumf %68, %69 : vector<2x256xf32>
    %c0_30 = arith.constant 0 : index
    %c2304 = arith.constant 2304 : index
    %71 = vector.load %arg5[%c0_30, %c2304] : memref<256x2816xbf16, #tpu.memory_space<vmem>>, vector<256x256xbf16>
    %72 = arith.truncf %62 : vector<2x256xf32> to vector<2x256xbf16>
    %cst_31 = arith.constant dense<0.000000e+00> : vector<2x256xf32>
    %73 = tpu.matmul %72, %71, %cst_31 {dimension_numbers = #tpu.dot_dimension_numbers<[1], [0], [0], [1], [0, 0, 1, 1], [], []>} : vector<2x256xbf16>, vector<256x256xbf16>, vector<2x256xf32> -> vector<2x256xf32>
    %c0_32 = arith.constant 0 : index
    %c2048_33 = arith.constant 2048 : index
    %74 = vector.load %arg6[%c0_32, %c2048_33] : memref<1x2560xf32, #tpu.memory_space<vmem>>, vector<1x256xf32>
    %75 = vector.broadcast %74 : vector<1x256xf32> to vector<2x256xf32>
    %76 = arith.addf %73, %75 : vector<2x256xf32>
    %cst_34 = arith.constant 0.000000e+00 : f32
    %77 = vector.broadcast %cst_34 : f32 to vector<2x256xf32>
    %78 = arith.maximumf %76, %77 : vector<2x256xf32>
    %79 = tpu.concatenate %70, %78 in 0 : vector<2x256xf32>, vector<2x256xf32> -> vector<4x256xf32>
    %c0_35 = arith.constant 0 : index
    %c2560 = arith.constant 2560 : index
    %80 = vector.load %arg5[%c0_35, %c2560] : memref<256x2816xbf16, #tpu.memory_space<vmem>>, vector<256x256xbf16>
    %81 = arith.truncf %79 : vector<4x256xf32> to vector<4x256xbf16>
    %cst_36 = arith.constant dense<0.000000e+00> : vector<4x256xf32>
    %82 = tpu.matmul %81, %80, %cst_36 {dimension_numbers = #tpu.dot_dimension_numbers<[1], [0], [0], [1], [0, 0, 1, 1], [], []>} : vector<4x256xbf16>, vector<256x256xbf16>, vector<4x256xf32> -> vector<4x256xf32>
    %83 = vector.extract_strided_slice %82 {offsets = [0, 0], sizes = [2, 128], strides = [1, 1]} : vector<4x256xf32> to vector<2x128xf32>
    %c0_37 = arith.constant 0 : index
    %c2304_38 = arith.constant 2304 : index
    %84 = vector.load %arg6[%c0_37, %c2304_38] : memref<1x2560xf32, #tpu.memory_space<vmem>>, vector<1x128xf32>
    %85 = vector.broadcast %84 : vector<1x128xf32> to vector<2x128xf32>
    %86 = arith.addf %83, %85 : vector<2x128xf32>
    %87 = vector.extract_strided_slice %82 {offsets = [2, 128], sizes = [2, 128], strides = [1, 1]} : vector<4x256xf32> to vector<2x128xf32>
    %c0_39 = arith.constant 0 : index
    %c2432 = arith.constant 2432 : index
    %88 = vector.load %arg6[%c0_39, %c2432] : memref<1x2560xf32, #tpu.memory_space<vmem>>, vector<1x128xf32>
    %89 = vector.broadcast %88 : vector<1x128xf32> to vector<2x128xf32>
    %90 = arith.addf %87, %89 : vector<2x128xf32>
    %cst_40 = arith.constant dense<0xFF800000> : vector<2xf32>
    %91 = vector.multi_reduction <maximumf>, %86, %cst_40 [1] : vector<2x128xf32> to vector<2xf32>
    %92 = vector.shape_cast %91 : vector<2xf32> to vector<2x1xf32>
    %93 = vector.broadcast %92 : vector<2x1xf32> to vector<2x128xf32>
    %94 = arith.subf %86, %93 : vector<2x128xf32>
    %95 = math.exp %94 : vector<2x128xf32>
    %cst_41 = arith.constant dense<0.000000e+00> : vector<2xf32>
    %96 = vector.multi_reduction <add>, %95, %cst_41 [1] : vector<2x128xf32> to vector<2xf32>
    %97 = vector.shape_cast %96 : vector<2xf32> to vector<2x1xf32>
    %98 = tpu.reciprocal %97 {approx = true} : vector<2x1xf32> -> vector<2x1xf32>
    %99 = vector.broadcast %98 : vector<2x1xf32> to vector<2x128xf32>
    %100 = arith.mulf %95, %99 : vector<2x128xf32>
    %c0_42 = arith.constant 0 : index
    %c0_43 = arith.constant 0 : index
    %c0_44 = arith.constant 0 : index
    %101 = vector.load %arg7[%c0_42, %c0_43, %c0_44] : memref<1x2x512xf32, #tpu.memory_space<vmem>>, vector<1x2x256xf32>
    %102 = vector.shape_cast %101 : vector<1x2x256xf32> to vector<2x256xf32>
    %103 = vector.shape_cast %51 : vector<2x256xf32> to vector<1x2x256xf32>
    tpu.vector_store %arg7[%c0_42, %c0_43, %c0_44], %103 {strides = array<i32>} : memref<1x2x512xf32, #tpu.memory_space<vmem>>, vector<1x2x256xf32>,
    %c0_45 = arith.constant 0 : index
    %c0_46 = arith.constant 0 : index
    %c256_47 = arith.constant 256 : index
    %104 = vector.load %arg7[%c0_45, %c0_46, %c256_47] : memref<1x2x512xf32, #tpu.memory_space<vmem>>, vector<1x2x128xf32>
    %105 = vector.shape_cast %104 : vector<1x2x128xf32> to vector<2x128xf32>
    %106 = vector.shape_cast %100 : vector<2x128xf32> to vector<1x2x128xf32>
    tpu.vector_store %arg7[%c0_45, %c0_46, %c256_47], %106 {strides = array<i32>} : memref<1x2x512xf32, #tpu.memory_space<vmem>>, vector<1x2x128xf32>,
    %c0_48 = arith.constant 0 : index
    %c0_49 = arith.constant 0 : index
    %c384 = arith.constant 384 : index
    %107 = vector.load %arg7[%c0_48, %c0_49, %c384] : memref<1x2x512xf32, #tpu.memory_space<vmem>>, vector<1x2x128xf32>
    %108 = vector.shape_cast %107 : vector<1x2x128xf32> to vector<2x128xf32>
    %109 = vector.shape_cast %90 : vector<2x128xf32> to vector<1x2x128xf32>
    tpu.vector_store %arg7[%c0_48, %c0_49, %c384], %109 {strides = array<i32>} : memref<1x2x512xf32, #tpu.memory_space<vmem>>, vector<1x2x128xf32>,
    return
  }
  func.func @transform_0(%arg0: i32, %arg1: i32) -> (i32, i32, i32) {
    %c0_i32 = arith.constant 0 : i32
    %c0_i32_0 = arith.constant 0 : i32
    return %arg1, %arg0, %c0_i32 : i32, i32, i32
  }
  func.func @transform_1(%arg0: i32, %arg1: i32) -> (i32, i32) {
    %c0_i32 = arith.constant 0 : i32
    %c0_i32_0 = arith.constant 0 : i32
    return %arg0, %c0_i32 : i32, i32
  }
  func.func @transform_2(%arg0: i32, %arg1: i32) -> (i32, i32) {
    %c0_i32 = arith.constant 0 : i32
    %c0_i32_0 = arith.constant 0 : i32
    %c0_i32_1 = arith.constant 0 : i32
    return %c0_i32, %c0_i32_0 : i32, i32
  }
  func.func @transform_3(%arg0: i32, %arg1: i32) -> (i32, i32) {
    %c0_i32 = arith.constant 0 : i32
    %c0_i32_0 = arith.constant 0 : i32
    %c0_i32_1 = arith.constant 0 : i32
    return %c0_i32, %c0_i32_0 : i32, i32
  }
  func.func @transform_4(%arg0: i32, %arg1: i32) -> (i32, i32) {
    %c0_i32 = arith.constant 0 : i32
    %c0_i32_0 = arith.constant 0 : i32
    %c0_i32_1 = arith.constant 0 : i32
    return %c0_i32, %c0_i32_0 : i32, i32
  }
  func.func @transform_5(%arg0: i32, %arg1: i32) -> (i32, i32, i32) {
    %c0_i32 = arith.constant 0 : i32
    %c0_i32_0 = arith.constant 0 : i32
    return %arg1, %arg0, %c0_i32 : i32, i32, i32
  }
}

</mosaic_0001>

<llo_original>
// kernel: tpu_custom_call.1
$region0: #{tpu_custom_call.1}
  #allocation0 [shape = 'u32[]', space=smem, size = 0x4, offset = 0x4, fixed_abs, tag = 'smem constant byte address 0x4 - core index']
  #allocation1 [shape = 'u32[72,128]{1,0:T(1,128)}', space=vmem, size = 0x9000, scoped, tag = 'internal scratch']
  #allocation2 [shape = 'f32[2,256]{1,0:T(2,128)}', space=vmem, size = 0x800, scoped, tag = 'scratch operand']
  %s0 = inlined_call_operand.hbm [shape: f32[1,2,16], index: 0, kind: input, shape index: {}]
  %s1 = inlined_call_operand.hbm [shape: f32[2,256], index: 1, kind: input, shape index: {}]
  %s2 = inlined_call_operand.hbm [shape: bf16[16,256], index: 2, kind: input, shape index: {}]
  %s3 = inlined_call_operand.hbm [shape: bf16[256,2816], index: 3, kind: input, shape index: {}]
  %s4 = inlined_call_operand.hbm [shape: f32[1,2560], index: 4, kind: input, shape index: {}]
  %s5 = inlined_call_operand.hbm [shape: f32[1,2,512], index: 5, kind: output, shape index: {}]
  %s6 = sld [smem:[#allocation0]]
  $region54: #{tpu_custom_call.1} parent=0
    _
  %s8 = ssub.s32 1, %s6
  %s9 = scalar_select 0, %s8, %s6
  $region1: #{tpu_custom_call.1} parent=0
    #allocation3 [shape = 'u8[1024]{0}', space=vmem, size = 0x400, scoped, tag = 'input window, operand 0, single buffered']
    #allocation4 [shape = 's32[1]{0}', space=sflag, size = 0x4, scoped, tag = 'scoped memory for tpu_custom_call.1']
    #allocation5 [shape = 's32[1]{0}', space=sflag, size = 0x4, scoped, tag = 'scoped memory for tpu_custom_call.1']
    #allocation6 [shape = 'u8[2048]{0}', space=vmem, size = 0x800, scoped, tag = 'input window, operand 1, single buffered']
    #allocation7 [shape = 's32[1]{0}', space=sflag, size = 0x4, scoped, tag = 'scoped memory for tpu_custom_call.1']
    #allocation8 [shape = 'u8[8192]{0}', space=vmem, size = 0x2000, scoped, tag = 'input window, operand 2, single buffered']
    #allocation9 [shape = 'u8[1441792]{0}', space=vmem, size = 0x160000, scoped, tag = 'input window, operand 3, single buffered']
    #allocation10 [shape = 's32[1]{0}', space=sflag, size = 0x4, scoped, tag = 'scoped memory for tpu_custom_call.1']
    #allocation11 [shape = 'u8[10240]{0}', space=vmem, size = 0x2800, scoped, tag = 'input window, operand 4, single buffered']
    #allocation12 [shape = 'u8[4096]{0}', space=vmem, size = 0x1000, scoped, tag = 'output window, operand 0, single buffered']
    %10 = vsyncpa [#allocation4], 0
    %11 = vsyncpa [#allocation7], 0
    %12 = vsyncpa [#allocation10], 0
    %13 = vsyncpa [#allocation5], 0
    // Predicated region
    $region2: #{tpu_custom_call.1} parent=1 // pred_check
      _
    $region3: #{tpu_custom_call.1} parent=1 // pred_check_branch
      %15 = sbr.rel (0) target = $region5
    $region4: #{tpu_custom_call.1} parent=1 // pred_region
      %17 = vsyncadd [#allocation4], 0
      %s19 = sshll.u32 %s0, 4
      %s20 = int_to_ptr.hbm [resolvable:$true] %s19
      %s21 = sshll.u32 [#allocation3], 4
      %s22 = int_to_ptr.vmem [resolvable:$true] %s21
      %24 = dma.hbm_to_vmem [thread:$0]  %s20, 32, %s22, [#allocation4]
    $region5: #{tpu_custom_call.1} parent=1 // pred_fallthru
      _
    // Predicated region
    $region6: #{tpu_custom_call.1} parent=1 // pred_check
      _
    $region7: #{tpu_custom_call.1} parent=1 // pred_check_branch
      %26 = sbr.rel (0) target = $region9
    $region8: #{tpu_custom_call.1} parent=1 // pred_region
      %28 = vsyncadd [#allocation7], 0
      %s30 = sshll.u32 %s1, 4
      %s31 = int_to_ptr.hbm [resolvable:$true] %s30
      %s32 = sshll.u32 [#allocation6], 4
      %s33 = int_to_ptr.vmem [resolvable:$true] %s32
      %35 = dma.hbm_to_vmem [thread:$0]  %s31, 64, %s33, [#allocation7]
    $region9: #{tpu_custom_call.1} parent=1 // pred_fallthru
      _
    // Predicated region
    $region10: #{tpu_custom_call.1} parent=1 // pred_check
      _
    $region11: #{tpu_custom_call.1} parent=1 // pred_check_branch
      %37 = sbr.rel (0) target = $region13
    $region12: #{tpu_custom_call.1} parent=1 // pred_region
      %39 = vsyncadd [#allocation7], 0
      %s40 = sshll.u32 %s2, 4
      %s41 = int_to_ptr.hbm [resolvable:$true] %s40
      %s42 = sshll.u32 [#allocation8], 4
      %s43 = int_to_ptr.vmem [resolvable:$true] %s42
      %48 = dma.hbm_to_vmem [thread:$0]  %s41, 256, %s43, [#allocation7], 128, 128, 8
    $region13: #{tpu_custom_call.1} parent=1 // pred_fallthru
      _
    // Predicated region
    $region14: #{tpu_custom_call.1} parent=1 // pred_check
      _
    $region15: #{tpu_custom_call.1} parent=1 // pred_check_branch
      %50 = sbr.rel (0) target = $region17
    $region16: #{tpu_custom_call.1} parent=1 // pred_region
      %52 = vsyncadd [#allocation10], 0
      %s53 = sshll.u32 %s3, 4
      %s54 = int_to_ptr.hbm [resolvable:$true] %s53
      %s55 = sshll.u32 [#allocation9], 4
      %s56 = int_to_ptr.vmem [resolvable:$true] %s55
      %61 = dma.hbm_to_vmem [thread:$0]  %s54, 45056, %s56, [#allocation10], 1408, 1408, 88
    $region17: #{tpu_custom_call.1} parent=1 // pred_fallthru
      _
    // Predicated region
    $region18: #{tpu_custom_call.1} parent=1 // pred_check
      _
    $region19: #{tpu_custom_call.1} parent=1 // pred_check_branch
      %63 = sbr.rel (0) target = $region21
    $region20: #{tpu_custom_call.1} parent=1 // pred_region
      %65 = vsyncadd [#allocation10], 0
      %s67 = sshll.u32 %s4, 4
      %s68 = int_to_ptr.hbm [resolvable:$true] %s67
      %s69 = sshll.u32 [#allocation11], 4
      %s70 = int_to_ptr.vmem [resolvable:$true] %s69
      %72 = dma.hbm_to_vmem [thread:$0]  %s68, 320, %s70, [#allocation10]
    $region21: #{tpu_custom_call.1} parent=1 // pred_fallthru
      _
    // Predicated region
    $region22: #{tpu_custom_call.1} parent=1 // pred_check
      _
    $region23: #{tpu_custom_call.1} parent=1 // pred_check_branch
      %74 = sbr.rel (0) target = $region25
    $region24: #{tpu_custom_call.1} parent=1 // pred_region
      %76 = dma.done [#allocation4], 32
    $region25: #{tpu_custom_call.1} parent=1 // pred_fallthru
      _
    // Predicated region
    $region26: #{tpu_custom_call.1} parent=1 // pred_check
      _
    $region27: #{tpu_custom_call.1} parent=1 // pred_check_branch
      %78 = sbr.rel (0) target = $region29
    $region28: #{tpu_custom_call.1} parent=1 // pred_region
      %80 = dma.done [#allocation7], 64
    $region29: #{tpu_custom_call.1} parent=1 // pred_fallthru
      _
    // Predicated region
    $region30: #{tpu_custom_call.1} parent=1 // pred_check
      _
    $region31: #{tpu_custom_call.1} parent=1 // pred_check_branch
      %82 = sbr.rel (0) target = $region33
    $region32: #{tpu_custom_call.1} parent=1 // pred_region
      %84 = dma.done [#allocation7], 256
    $region33: #{tpu_custom_call.1} parent=1 // pred_fallthru
      _
    // Predicated region
    $region34: #{tpu_custom_call.1} parent=1 // pred_check
      _
    $region35: #{tpu_custom_call.1} parent=1 // pred_check_branch
      %86 = sbr.rel (0) target = $region37
    $region36: #{tpu_custom_call.1} parent=1 // pred_region
      %88 = dma.done [#allocation10], 45056
    $region37: #{tpu_custom_call.1} parent=1 // pred_fallthru
      _
    // Predicated region
    $region38: #{tpu_custom_call.1} parent=1 // pred_check
      _
    $region39: #{tpu_custom_call.1} parent=1 // pred_check_branch
      %90 = sbr.rel (0) target = $region41
    $region40: #{tpu_custom_call.1} parent=1 // pred_region
      %92 = dma.done [#allocation10], 320
    $region41: #{tpu_custom_call.1} parent=1 // pred_fallthru
      _
    %p94 = scmp.eq.s32.totalorder 0, 0
    // Predicated region
    $region42: #{tpu_custom_call.1} parent=1 // pred_check
      %p95 = pneg %p94
    $region43: #{tpu_custom_call.1} parent=1 // pred_check_branch
      %97 = sbr.rel (%p95) target = $region45
    $region44: #{tpu_custom_call.1} parent=1 // pred_region
      %v98 = vld [vmem:[#allocation6] sm:$0xf]
      %99 = vst [vmem:[#allocation2] sm:$0xf] %v98
    $region45: #{tpu_custom_call.1} parent=1 // pred_fallthru
      _
    %v100 = vld [vmem:[#allocation3] sm:$0x3]
    %v101 = vld [vmem:[#allocation8] sm:$0xff]
    %v102 = vld [vmem:[#allocation8 + $0x8] sm:$0xff]
    %v103 = vpack.c.bf16 %v100, %v100
    %v104 = vld [vmem:[#allocation11] sm:$0x3]
    %v106 = vperm.slane %v104, 0
    %v107 = vperm.slane %v104, 1
    %v112 = vunpack.c.l.b16 %v101
    %v113 = vunpack.c.h.b16 %v101
    %v114 = vunpack.c.l.b16 %v102
    %v115 = vunpack.c.h.b16 %v102
    %v116 = vpack.c.b16 %v114, %v112
    %v117 = vpack.c.b16 %v115, %v113
    %vm120 = vcmask 130048
    %v122 = vsel %vm120, %v103, 0
    %124 = vmatpush.bf16.msra.mxu0 0
    %125 = vmatpush.bf16.msra.mxu0 0
    %126 = vmatpush.bf16.msra.mxu0 0
    %127 = vmatpush.bf16.msra.mxu0 0
    %128 = vmatpush.bf16.msra.mxu0 0
    %129 = vmatpush.bf16.msra.mxu0 0
    %130 = vmatpush.bf16.msra.mxu0 0
    %131 = vmatpush.bf16.msra.mxu0 %v116
    %132 = vmatmul.bf16.gmra.mxu0 %v122
    %v133 = vpop.f32.mrf.mxu0
    %v134 = vadd.f32 %v106, %v133
    %v135 = vpop.f32.mrf.mxu0
    %136 = vdwg.mxu0
    %137 = vmatpush.bf16.msra.mxu0 0
    %138 = vmatpush.bf16.msra.mxu0 0
    %139 = vmatpush.bf16.msra.mxu0 0
    %140 = vmatpush.bf16.msra.mxu0 0
    %141 = vmatpush.bf16.msra.mxu0 0
    %142 = vmatpush.bf16.msra.mxu0 0
    %143 = vmatpush.bf16.msra.mxu0 0
    %144 = vmatpush.bf16.msra.mxu0 %v117
    %145 = vmatmul.bf16.gmra.mxu0 %v122
    %v146 = vpop.f32.mrf.mxu0
    %v147 = vadd.f32 %v107, %v146
    %v148 = vpop.f32.mrf.mxu0
    %149 = vdwg.mxu0
    %v150 = vmax.f32 %v134, 0.0
    %v151 = vmax.f32 %v147, 0.0
    %v152 = vld [vmem:[#allocation2] sm:$0xf]
    %v153 = vld [vmem:[#allocation9] sm:$0xff]
    %v154 = vld [vmem:[#allocation9 + $0x8] sm:$0xff]
    %v155 = vld [vmem:[#allocation9 + $0x10] sm:$0xff]
    %v156 = vld [vmem:[#allocation9 + $0x58] sm:$0xff]
    %v157 = vld [vmem:[#allocation9 + $0x60] sm:$0xff]
    %v158 = vld [vmem:[#allocation9 + $0x68] sm:$0xff]
    %v159 = vld [vmem:[#allocation9 + $0xb0] sm:$0xff]
    %v160 = vld [vmem:[#allocation9 + $0xb8] sm:$0xff]
    %v161 = vld [vmem:[#allocation9 + $0xc0] sm:$0xff]
    %v162 = vld [vmem:[#allocation9 + $0x108] sm:$0xff]
    %v163 = vld [vmem:[#allocation9 + $0x110] sm:$0xff]
    %v164 = vld [vmem:[#allocation9 + $0x118] sm:$0xff]
    %v165 = vld [vmem:[#allocation9 + $0x160] sm:$0xff]
    %v166 = vld [vmem:[#allocation9 + $0x168] sm:$0xff]
    %v167 = vld [vmem:[#allocation9 + $0x170] sm:$0xff]
    %v168 = vld [vmem:[#allocation9 + $0x1b8] sm:$0xff]
    %v169 = vld [vmem:[#allocation9 + $0x1c0] sm:$0xff]
    %v170 = vld [vmem:[#allocation9 + $0x1c8] sm:$0xff]
    %v171 = vld [vmem:[#allocation9 + $0x210] sm:$0xff]
    %v172 = vld [vmem:[#allocation9 + $0x218] sm:$0xff]
    %v173 = vld [vmem:[#allocation9 + $0x220] sm:$0xff]
    %v174 = vld [vmem:[#allocation9 + $0x268] sm:$0xff]
    %v175 = vld [vmem:[#allocation9 + $0x270] sm:$0xff]
    %v176 = vld [vmem:[#allocation9 + $0x278] sm:$0xff]
    %v177 = vld [vmem:[#allocation9 + $0x2c0] sm:$0xff]
    %v178 = vld [vmem:[#allocation9 + $0x2c8] sm:$0xff]
    %v179 = vld [vmem:[#allocation9 + $0x2d0] sm:$0xff]
    %v180 = vld [vmem:[#allocation9 + $0x318] sm:$0xff]
    %v181 = vld [vmem:[#allocation9 + $0x320] sm:$0xff]
    %v182 = vld [vmem:[#allocation9 + $0x328] sm:$0xff]
    %v183 = vld [vmem:[#allocation9 + $0x370] sm:$0xff]
    %v184 = vld [vmem:[#allocation9 + $0x378] sm:$0xff]
    %v185 = vld [vmem:[#allocation9 + $0x380] sm:$0xff]
    %v186 = vld [vmem:[#allocation9 + $0x3c8] sm:$0xff]
    %v187 = vld [vmem:[#allocation9 + $0x3d0] sm:$0xff]
    %v188 = vld [vmem:[#allocation9 + $0x3d8] sm:$0xff]
    %v189 = vld [vmem:[#allocation9 + $0x420] sm:$0xff]
    %v190 = vld [vmem:[#allocation9 + $0x428] sm:$0xff]
    %v191 = vld [vmem:[#allocation9 + $0x430] sm:$0xff]
    %v192 = vld [vmem:[#allocation9 + $0x478] sm:$0xff]
    %v193 = vld [vmem:[#allocation9 + $0x480] sm:$0xff]
    %v194 = vld [vmem:[#allocation9 + $0x488] sm:$0xff]
    %v195 = vld [vmem:[#allocation9 + $0x4d0] sm:$0xff]
    %v196 = vld [vmem:[#allocation9 + $0x4d8] sm:$0xff]
    %v197 = vld [vmem:[#allocation9 + $0x4e0] sm:$0xff]
    %v198 = vld [vmem:[#allocation9 + $0x528] sm:$0xff]
    %v199 = vld [vmem:[#allocation9 + $0x530] sm:$0xff]
    %v200 = vld [vmem:[#allocation9 + $0x538] sm:$0xff]
    %v201 = vld [vmem:[#allocation9 + $0x580] sm:$0xff]
    %v202 = vld [vmem:[#allocation9 + $0x588] sm:$0xff]
    %v203 = vld [vmem:[#allocation9 + $0x590] sm:$0xff]
    %v204 = vld [vmem:[#allocation9 + $0x5d8] sm:$0xff]
    %v205 = vld [vmem:[#allocation9 + $0x5e0] sm:$0xff]
    %v206 = vld [vmem:[#allocation9 + $0x5e8] sm:$0xff]
    %v207 = vld [vmem:[#allocation9 + $0x630] sm:$0xff]
    %v208 = vld [vmem:[#allocation9 + $0x638] sm:$0xff]
    %v209 = vld [vmem:[#allocation9 + $0x640] sm:$0xff]
    %v210 = vld [vmem:[#allocation9 + $0x688] sm:$0xff]
    %v211 = vld [vmem:[#allocation9 + $0x690] sm:$0xff]
    %v212 = vld [vmem:[#allocation9 + $0x698] sm:$0xff]
    %v213 = vld [vmem:[#allocation9 + $0x6e0] sm:$0xff]
    %v214 = vld [vmem:[#allocation9 + $0x6e8] sm:$0xff]
    %v215 = vld [vmem:[#allocation9 + $0x6f0] sm:$0xff]
    %v216 = vld [vmem:[#allocation9 + $0x738] sm:$0xff]
    %v217 = vld [vmem:[#allocation9 + $0x740] sm:$0xff]
    %v218 = vld [vmem:[#allocation9 + $0x748] sm:$0xff]
    %v219 = vld [vmem:[#allocation9 + $0x790] sm:$0xff]
    %v220 = vld [vmem:[#allocation9 + $0x798] sm:$0xff]
    %v221 = vld [vmem:[#allocation9 + $0x7a0] sm:$0xff]
    %v222 = vld [vmem:[#allocation9 + $0x7e8] sm:$0xff]
    %v223 = vld [vmem:[#allocation9 + $0x7f0] sm:$0xff]
    %v224 = vld [vmem:[#allocation9 + $0x7f8] sm:$0xff]
    %v225 = vld [vmem:[#allocation9 + $0x840] sm:$0xff]
    %v226 = vld [vmem:[#allocation9 + $0x848] sm:$0xff]
    %v227 = vld [vmem:[#allocation9 + $0x850] sm:$0xff]
    %v228 = vld [vmem:[#allocation9 + $0x898] sm:$0xff]
    %v229 = vld [vmem:[#allocation9 + $0x8a0] sm:$0xff]
    %v230 = vld [vmem:[#allocation9 + $0x8a8] sm:$0xff]
    %v231 = vld [vmem:[#allocation9 + $0x8f0] sm:$0xff]
    %v232 = vld [vmem:[#allocation9 + $0x8f8] sm:$0xff]
    %v233 = vld [vmem:[#allocation9 + $0x900] sm:$0xff]
    %v234 = vld [vmem:[#allocation9 + $0x948] sm:$0xff]
    %v235 = vld [vmem:[#allocation9 + $0x950] sm:$0xff]
    %v236 = vld [vmem:[#allocation9 + $0x958] sm:$0xff]
    %v237 = vld [vmem:[#allocation9 + $0x9a0] sm:$0xff]
    %v238 = vld [vmem:[#allocation9 + $0x9a8] sm:$0xff]
    %v239 = vld [vmem:[#allocation9 + $0x9b0] sm:$0xff]
    %v240 = vld [vmem:[#allocation9 + $0x9f8] sm:$0xff]
    %v241 = vld [vmem:[#allocation9 + $0xa00] sm:$0xff]
    %v242 = vld [vmem:[#allocation9 + $0xa08] sm:$0xff]
    %v243 = vld [vmem:[#allocation9 + $0xa50] sm:$0xff]
    %v244 = vld [vmem:[#allocation9 + $0xa58] sm:$0xff]
    %v245 = vld [vmem:[#allocation9 + $0xa60] sm:$0xff]
    %v246 = vld [vmem:[#allocation9 + $0xaa8] sm:$0xff]
    %v247 = vld [vmem:[#allocation9 + $0xab0] sm:$0xff]
    %v248 = vld [vmem:[#allocation9 + $0xab8] sm:$0xff]
    %v249 = vpack.c.bf16 %v150, %v150
    %v250 = vpack.c.bf16 %v151, %v151
    %v251 = vld [vmem:[#allocation11 + $0x2] sm:$0x3f]
    %v253 = vperm.slane %v251, 0
    %v254 = vperm.slane %v251, 1
    %v255 = vperm.slane %v251, 2
    %v256 = vperm.slane %v251, 3
    %v257 = vperm.slane %v251, 4
    %v258 = vperm.slane %v251, 5
    %v361 = vunpack.c.l.b16 %v153
    %v362 = vunpack.c.h.b16 %v153
    %v363 = vunpack.c.l.b16 %v154
    %v364 = vunpack.c.h.b16 %v154
    %v365 = vunpack.c.l.b16 %v155
    %v366 = vunpack.c.h.b16 %v155
    %v367 = vunpack.c.l.b16 %v156
    %v368 = vunpack.c.h.b16 %v156
    %v369 = vunpack.c.l.b16 %v157
    %v370 = vunpack.c.h.b16 %v157
    %v371 = vunpack.c.l.b16 %v158
    %v372 = vunpack.c.h.b16 %v158
    %v373 = vunpack.c.l.b16 %v159
    %v374 = vunpack.c.h.b16 %v159
    %v375 = vunpack.c.l.b16 %v160
    %v376 = vunpack.c.h.b16 %v160
    %v377 = vunpack.c.l.b16 %v161
    %v378 = vunpack.c.h.b16 %v161
    %v379 = vunpack.c.l.b16 %v162
    %v380 = vunpack.c.h.b16 %v162
    %v381 = vunpack.c.l.b16 %v163
    %v382 = vunpack.c.h.b16 %v163
    %v383 = vunpack.c.l.b16 %v164
    %v384 = vunpack.c.h.b16 %v164
    %v385 = vunpack.c.l.b16 %v165
    %v386 = vunpack.c.h.b16 %v165
    %v387 = vunpack.c.l.b16 %v166
    %v388 = vunpack.c.h.b16 %v166
    %v389 = vunpack.c.l.b16 %v167
    %v390 = vunpack.c.h.b16 %v167
    %v391 = vunpack.c.l.b16 %v168
    %v392 = vunpack.c.h.b16 %v168
    %v393 = vunpack.c.l.b16 %v169
    %v394 = vunpack.c.h.b16 %v169
    %v395 = vunpack.c.l.b16 %v170
    %v396 = vunpack.c.h.b16 %v170
    %v397 = vunpack.c.l.b16 %v171
    %v398 = vunpack.c.h.b16 %v171
    %v399 = vunpack.c.l.b16 %v172
    %v400 = vunpack.c.h.b16 %v172
    %v401 = vunpack.c.l.b16 %v173
    %v402 = vunpack.c.h.b16 %v173
    %v403 = vunpack.c.l.b16 %v174
    %v404 = vunpack.c.h.b16 %v174
    %v405 = vunpack.c.l.b16 %v175
    %v406 = vunpack.c.h.b16 %v175
    %v407 = vunpack.c.l.b16 %v176
    %v408 = vunpack.c.h.b16 %v176
    %v409 = vunpack.c.l.b16 %v177
    %v410 = vunpack.c.h.b16 %v177
    %v411 = vunpack.c.l.b16 %v178
    %v412 = vunpack.c.h.b16 %v178
    %v413 = vunpack.c.l.b16 %v179
    %v414 = vunpack.c.h.b16 %v179
    %v415 = vunpack.c.l.b16 %v180
    %v416 = vunpack.c.h.b16 %v180
    %v417 = vunpack.c.l.b16 %v181
    %v418 = vunpack.c.h.b16 %v181
    %v419 = vunpack.c.l.b16 %v182
    %v420 = vunpack.c.h.b16 %v182
    %v421 = vunpack.c.l.b16 %v183
    %v422 = vunpack.c.h.b16 %v183
    %v423 = vunpack.c.l.b16 %v184
    %v424 = vunpack.c.h.b16 %v184
    %v425 = vunpack.c.l.b16 %v185
    %v426 = vunpack.c.h.b16 %v185
    %v427 = vunpack.c.l.b16 %v186
    %v428 = vunpack.c.h.b16 %v186
    %v429 = vunpack.c.l.b16 %v187
    %v430 = vunpack.c.h.b16 %v187
    %v431 = vunpack.c.l.b16 %v188
    %v432 = vunpack.c.h.b16 %v188
    %v433 = vunpack.c.l.b16 %v189
    %v434 = vunpack.c.h.b16 %v189
    %v435 = vunpack.c.l.b16 %v190
    %v436 = vunpack.c.h.b16 %v190
    %v437 = vunpack.c.l.b16 %v191
    %v438 = vunpack.c.h.b16 %v191
    %v439 = vunpack.c.l.b16 %v192
    %v440 = vunpack.c.h.b16 %v192
    %v441 = vunpack.c.l.b16 %v193
    %v442 = vunpack.c.h.b16 %v193
    %v443 = vunpack.c.l.b16 %v194
    %v444 = vunpack.c.h.b16 %v194
    %v445 = vunpack.c.l.b16 %v195
    %v446 = vunpack.c.h.b16 %v195
    %v447 = vunpack.c.l.b16 %v196
    %v448 = vunpack.c.h.b16 %v196
    %v449 = vunpack.c.l.b16 %v197
    %v450 = vunpack.c.h.b16 %v197
    %v451 = vunpack.c.l.b16 %v198
    %v452 = vunpack.c.h.b16 %v198
    %v453 = vunpack.c.l.b16 %v199
    %v454 = vunpack.c.h.b16 %v199
    %v455 = vunpack.c.l.b16 %v200
    %v456 = vunpack.c.h.b16 %v200
    %v457 = vunpack.c.l.b16 %v201
    %v458 = vunpack.c.h.b16 %v201
    %v459 = vunpack.c.l.b16 %v202
    %v460 = vunpack.c.h.b16 %v202
    %v461 = vunpack.c.l.b16 %v203
    %v462 = vunpack.c.h.b16 %v203
    %v463 = vunpack.c.l.b16 %v204
    %v464 = vunpack.c.h.b16 %v204
    %v465 = vunpack.c.l.b16 %v205
    %v466 = vunpack.c.h.b16 %v205
    %v467 = vunpack.c.l.b16 %v206
    %v468 = vunpack.c.h.b16 %v206
    %v469 = vunpack.c.l.b16 %v207
    %v470 = vunpack.c.h.b16 %v207
    %v471 = vunpack.c.l.b16 %v208
    %v472 = vunpack.c.h.b16 %v208
    %v473 = vunpack.c.l.b16 %v209
    %v474 = vunpack.c.h.b16 %v209
    %v475 = vunpack.c.l.b16 %v210
    %v476 = vunpack.c.h.b16 %v210
    %v477 = vunpack.c.l.b16 %v211
    %v478 = vunpack.c.h.b16 %v211
    %v479 = vunpack.c.l.b16 %v212
    %v480 = vunpack.c.h.b16 %v212
    %v481 = vunpack.c.l.b16 %v213
    %v482 = vunpack.c.h.b16 %v213
    %v483 = vunpack.c.l.b16 %v214
    %v484 = vunpack.c.h.b16 %v214
    %v485 = vunpack.c.l.b16 %v215
    %v486 = vunpack.c.h.b16 %v215
    %v487 = vunpack.c.l.b16 %v216
    %v488 = vunpack.c.h.b16 %v216
    %v489 = vunpack.c.l.b16 %v217
    %v490 = vunpack.c.h.b16 %v217
    %v491 = vunpack.c.l.b16 %v218
    %v492 = vunpack.c.h.b16 %v218
    %v493 = vunpack.c.l.b16 %v219
    %v494 = vunpack.c.h.b16 %v219
    %v495 = vunpack.c.l.b16 %v220
    %v496 = vunpack.c.h.b16 %v220
    %v497 = vunpack.c.l.b16 %v221
    %v498 = vunpack.c.h.b16 %v221
    %v499 = vunpack.c.l.b16 %v222
    %v500 = vunpack.c.h.b16 %v222
    %v501 = vunpack.c.l.b16 %v223
    %v502 = vunpack.c.h.b16 %v223
    %v503 = vunpack.c.l.b16 %v224
    %v504 = vunpack.c.h.b16 %v224
    %v505 = vunpack.c.l.b16 %v225
    %v506 = vunpack.c.h.b16 %v225
    %v507 = vunpack.c.l.b16 %v226
    %v508 = vunpack.c.h.b16 %v226
    %v509 = vunpack.c.l.b16 %v227
    %v510 = vunpack.c.h.b16 %v227
    %v511 = vunpack.c.l.b16 %v228
    %v512 = vunpack.c.h.b16 %v228
    %v513 = vunpack.c.l.b16 %v229
    %v514 = vunpack.c.h.b16 %v229
    %v515 = vunpack.c.l.b16 %v230
    %v516 = vunpack.c.h.b16 %v230
    %v517 = vunpack.c.l.b16 %v231
    %v518 = vunpack.c.h.b16 %v231
    %v519 = vunpack.c.l.b16 %v232
    %v520 = vunpack.c.h.b16 %v232
    %v521 = vunpack.c.l.b16 %v233
    %v522 = vunpack.c.h.b16 %v233
    %v523 = vunpack.c.l.b16 %v234
    %v524 = vunpack.c.h.b16 %v234
    %v525 = vunpack.c.l.b16 %v235
    %v526 = vunpack.c.h.b16 %v235
    %v527 = vunpack.c.l.b16 %v236
    %v528 = vunpack.c.h.b16 %v236
    %v529 = vunpack.c.l.b16 %v237
    %v530 = vunpack.c.h.b16 %v237
    %v531 = vunpack.c.l.b16 %v238
    %v532 = vunpack.c.h.b16 %v238
    %v533 = vunpack.c.l.b16 %v239
    %v534 = vunpack.c.h.b16 %v239
    %v535 = vunpack.c.l.b16 %v240
    %v536 = vunpack.c.h.b16 %v240
    %v537 = vunpack.c.l.b16 %v241
    %v538 = vunpack.c.h.b16 %v241
    %v539 = vunpack.c.l.b16 %v242
    %v540 = vunpack.c.h.b16 %v242
    %v541 = vunpack.c.l.b16 %v243
    %v542 = vunpack.c.h.b16 %v243
    %v543 = vunpack.c.l.b16 %v244
    %v544 = vunpack.c.h.b16 %v244
    %v545 = vunpack.c.l.b16 %v245
    %v546 = vunpack.c.h.b16 %v245
    %v547 = vunpack.c.l.b16 %v246
    %v548 = vunpack.c.h.b16 %v246
    %v549 = vunpack.c.l.b16 %v247
    %v550 = vunpack.c.h.b16 %v247
    %v551 = vunpack.c.l.b16 %v248
    %v552 = vunpack.c.h.b16 %v248
    %v553 = vpack.c.b16 %v367, %v361
    %v554 = vpack.c.b16 %v368, %v362
    %v555 = vpack.c.b16 %v369, %v363
    %v556 = vpack.c.b16 %v370, %v364
    %v557 = vpack.c.b16 %v371, %v365
    %v558 = vpack.c.b16 %v372, %v366
    %v559 = vpack.c.b16 %v379, %v373
    %v560 = vpack.c.b16 %v380, %v374
    %v561 = vpack.c.b16 %v381, %v375
    %v562 = vpack.c.b16 %v382, %v376
    %v563 = vpack.c.b16 %v383, %v377
    %v564 = vpack.c.b16 %v384, %v378
    %v565 = vpack.c.b16 %v391, %v385
    %v566 = vpack.c.b16 %v392, %v386
    %v567 = vpack.c.b16 %v393, %v387
    %v568 = vpack.c.b16 %v394, %v388
    %v569 = vpack.c.b16 %v395, %v389
    %v570 = vpack.c.b16 %v396, %v390
    %v571 = vpack.c.b16 %v403, %v397
    %v572 = vpack.c.b16 %v404, %v398
    %v573 = vpack.c.b16 %v405, %v399
    %v574 = vpack.c.b16 %v406, %v400
    %v575 = vpack.c.b16 %v407, %v401
    %v576 = vpack.c.b16 %v408, %v402
    %v577 = vpack.c.b16 %v415, %v409
    %v578 = vpack.c.b16 %v416, %v410
    %v579 = vpack.c.b16 %v417, %v411
    %v580 = vpack.c.b16 %v418, %v412
    %v581 = vpack.c.b16 %v419, %v413
    %v582 = vpack.c.b16 %v420, %v414
    %v583 = vpack.c.b16 %v427, %v421
    %v584 = vpack.c.b16 %v428, %v422
    %v585 = vpack.c.b16 %v429, %v423
    %v586 = vpack.c.b16 %v430, %v424
    %v587 = vpack.c.b16 %v431, %v425
    %v588 = vpack.c.b16 %v432, %v426
    %v589 = vpack.c.b16 %v439, %v433
    %v590 = vpack.c.b16 %v440, %v434
    %v591 = vpack.c.b16 %v441, %v435
    %v592 = vpack.c.b16 %v442, %v436
    %v593 = vpack.c.b16 %v443, %v437
    %v594 = vpack.c.b16 %v444, %v438
    %v595 = vpack.c.b16 %v451, %v445
    %v596 = vpack.c.b16 %v452, %v446
    %v597 = vpack.c.b16 %v453, %v447
    %v598 = vpack.c.b16 %v454, %v448
    %v599 = vpack.c.b16 %v455, %v449
    %v600 = vpack.c.b16 %v456, %v450
    %v601 = vpack.c.b16 %v463, %v457
    %v602 = vpack.c.b16 %v464, %v458
    %v603 = vpack.c.b16 %v465, %v459
    %v604 = vpack.c.b16 %v466, %v460
    %v605 = vpack.c.b16 %v467, %v461
    %v606 = vpack.c.b16 %v468, %v462
    %v607 = vpack.c.b16 %v475, %v469
    %v608 = vpack.c.b16 %v476, %v470
    %v609 = vpack.c.b16 %v477, %v471
    %v610 = vpack.c.b16 %v478, %v472
    %v611 = vpack.c.b16 %v479, %v473
    %v612 = vpack.c.b16 %v480, %v474
    %v613 = vpack.c.b16 %v487, %v481
    %v614 = vpack.c.b16 %v488, %v482
    %v615 = vpack.c.b16 %v489, %v483
    %v616 = vpack.c.b16 %v490, %v484
    %v617 = vpack.c.b16 %v491, %v485
    %v618 = vpack.c.b16 %v492, %v486
    %v619 = vpack.c.b16 %v499, %v493
    %v620 = vpack.c.b16 %v500, %v494
    %v621 = vpack.c.b16 %v501, %v495
    %v622 = vpack.c.b16 %v502, %v496
    %v623 = vpack.c.b16 %v503, %v497
    %v624 = vpack.c.b16 %v504, %v498
    %v625 = vpack.c.b16 %v511, %v505
    %v626 = vpack.c.b16 %v512, %v506
    %v627 = vpack.c.b16 %v513, %v507
    %v628 = vpack.c.b16 %v514, %v508
    %v629 = vpack.c.b16 %v515, %v509
    %v630 = vpack.c.b16 %v516, %v510
    %v631 = vpack.c.b16 %v523, %v517
    %v632 = vpack.c.b16 %v524, %v518
    %v633 = vpack.c.b16 %v525, %v519
    %v634 = vpack.c.b16 %v526, %v520
    %v635 = vpack.c.b16 %v527, %v521
    %v636 = vpack.c.b16 %v528, %v522
    %v637 = vpack.c.b16 %v535, %v529
    %v638 = vpack.c.b16 %v536, %v530
    %v639 = vpack.c.b16 %v537, %v531
    %v640 = vpack.c.b16 %v538, %v532
    %v641 = vpack.c.b16 %v539, %v533
    %v642 = vpack.c.b16 %v540, %v534
    %v643 = vpack.c.b16 %v547, %v541
    %v644 = vpack.c.b16 %v548, %v542
    %v645 = vpack.c.b16 %v549, %v543
    %v646 = vpack.c.b16 %v550, %v544
    %v647 = vpack.c.b16 %v551, %v545
    %v648 = vpack.c.b16 %v552, %v546
    %745 = vmatpush.bf16.msra.mxu0 %v595
    %746 = vmatpush.bf16.msra.mxu0 %v589
    %747 = vmatpush.bf16.msra.mxu0 %v583
    %748 = vmatpush.bf16.msra.mxu0 %v577
    %749 = vmatpush.bf16.msra.mxu0 %v571
    %750 = vmatpush.bf16.msra.mxu0 %v565
    %751 = vmatpush.bf16.msra.mxu0 %v559
    %752 = vmatpush.bf16.msra.mxu0 %v553
    %753 = vmatmul.bf16.gmra.mxu0 %v249
    %v754 = vpop.f32.mrf.mxu0
    %v755 = vadd.f32 %v253, %v754
    %v756 = vpop.f32.mrf.mxu0
    %757 = vdwg.mxu0
    %758 = vmatpush.bf16.msra.mxu0 %v643
    %759 = vmatpush.bf16.msra.mxu0 %v637
    %760 = vmatpush.bf16.msra.mxu0 %v631
    %761 = vmatpush.bf16.msra.mxu0 %v625
    %762 = vmatpush.bf16.msra.mxu0 %v619
    %763 = vmatpush.bf16.msra.mxu0 %v613
    %764 = vmatpush.bf16.msra.mxu0 %v607
    %765 = vmatpush.bf16.msra.mxu0 %v601
    %766 = vmatmul.bf16.gmra.mxu0 %v250
    %v767 = vpop.f32.mrf.mxu0
    %v768 = vadd.f32 %v755, %v767
    %v769 = vpop.f32.mrf.mxu0
    %770 = vdwg.mxu0
    %771 = vmatpush.bf16.msra.mxu0 %v596
    %772 = vmatpush.bf16.msra.mxu0 %v590
    %773 = vmatpush.bf16.msra.mxu0 %v584
    %774 = vmatpush.bf16.msra.mxu0 %v578
    %775 = vmatpush.bf16.msra.mxu0 %v572
    %776 = vmatpush.bf16.msra.mxu0 %v566
    %777 = vmatpush.bf16.msra.mxu0 %v560
    %778 = vmatpush.bf16.msra.mxu0 %v554
    %779 = vmatmul.bf16.gmra.mxu0 %v249
    %v780 = vpop.f32.mrf.mxu0
    %v781 = vadd.f32 %v254, %v780
    %v782 = vpop.f32.mrf.mxu0
    %783 = vdwg.mxu0
    %784 = vmatpush.bf16.msra.mxu0 %v644
    %785 = vmatpush.bf16.msra.mxu0 %v638
    %786 = vmatpush.bf16.msra.mxu0 %v632
    %787 = vmatpush.bf16.msra.mxu0 %v626
    %788 = vmatpush.bf16.msra.mxu0 %v620
    %789 = vmatpush.bf16.msra.mxu0 %v614
    %790 = vmatpush.bf16.msra.mxu0 %v608
    %791 = vmatpush.bf16.msra.mxu0 %v602
    %792 = vmatmul.bf16.gmra.mxu0 %v250
    %v793 = vpop.f32.mrf.mxu0
    %v794 = vadd.f32 %v781, %v793
    %v795 = vpop.f32.mrf.mxu0
    %796 = vdwg.mxu0
    %797 = vmatpush.bf16.msra.mxu0 %v597
    %798 = vmatpush.bf16.msra.mxu0 %v591
    %799 = vmatpush.bf16.msra.mxu0 %v585
    %800 = vmatpush.bf16.msra.mxu0 %v579
    %801 = vmatpush.bf16.msra.mxu0 %v573
    %802 = vmatpush.bf16.msra.mxu0 %v567
    %803 = vmatpush.bf16.msra.mxu0 %v561
    %804 = vmatpush.bf16.msra.mxu0 %v555
    %805 = vmatmul.bf16.gmra.mxu0 %v249
    %v806 = vpop.f32.mrf.mxu0
    %v807 = vadd.f32 %v255, %v806
    %v808 = vpop.f32.mrf.mxu0
    %809 = vdwg.mxu0
    %810 = vmatpush.bf16.msra.mxu0 %v645
    %811 = vmatpush.bf16.msra.mxu0 %v639
    %812 = vmatpush.bf16.msra.mxu0 %v633
    %813 = vmatpush.bf16.msra.mxu0 %v627
    %814 = vmatpush.bf16.msra.mxu0 %v621
    %815 = vmatpush.bf16.msra.mxu0 %v615
    %816 = vmatpush.bf16.msra.mxu0 %v609
    %817 = vmatpush.bf16.msra.mxu0 %v603
    %818 = vmatmul.bf16.gmra.mxu0 %v250
    %v819 = vpop.f32.mrf.mxu0
    %v820 = vadd.f32 %v807, %v819
    %v821 = vpop.f32.mrf.mxu0
    %822 = vdwg.mxu0
    %823 = vmatpush.bf16.msra.mxu0 %v598
    %824 = vmatpush.bf16.msra.mxu0 %v592
    %825 = vmatpush.bf16.msra.mxu0 %v586
    %826 = vmatpush.bf16.msra.mxu0 %v580
    %827 = vmatpush.bf16.msra.mxu0 %v574
    %828 = vmatpush.bf16.msra.mxu0 %v568
    %829 = vmatpush.bf16.msra.mxu0 %v562
    %830 = vmatpush.bf16.msra.mxu0 %v556
    %831 = vmatmul.bf16.gmra.mxu0 %v249
    %v832 = vpop.f32.mrf.mxu0
    %v833 = vadd.f32 %v256, %v832
    %v834 = vpop.f32.mrf.mxu0
    %835 = vdwg.mxu0
    %836 = vmatpush.bf16.msra.mxu0 %v646
    %837 = vmatpush.bf16.msra.mxu0 %v640
    %838 = vmatpush.bf16.msra.mxu0 %v634
    %839 = vmatpush.bf16.msra.mxu0 %v628
    %840 = vmatpush.bf16.msra.mxu0 %v622
    %841 = vmatpush.bf16.msra.mxu0 %v616
    %842 = vmatpush.bf16.msra.mxu0 %v610
    %843 = vmatpush.bf16.msra.mxu0 %v604
    %844 = vmatmul.bf16.gmra.mxu0 %v250
    %v845 = vpop.f32.mrf.mxu0
    %v846 = vadd.f32 %v833, %v845
    %v847 = vpop.f32.mrf.mxu0
    %848 = vdwg.mxu0
    %849 = vmatpush.bf16.msra.mxu0 %v599
    %850 = vmatpush.bf16.msra.mxu0 %v593
    %851 = vmatpush.bf16.msra.mxu0 %v587
    %852 = vmatpush.bf16.msra.mxu0 %v581
    %853 = vmatpush.bf16.msra.mxu0 %v575
    %854 = vmatpush.bf16.msra.mxu0 %v569
    %855 = vmatpush.bf16.msra.mxu0 %v563
    %856 = vmatpush.bf16.msra.mxu0 %v557
    %857 = vmatmul.bf16.gmra.mxu0 %v249
    %v858 = vpop.f32.mrf.mxu0
    %v859 = vadd.f32 %v257, %v858
    %v860 = vpop.f32.mrf.mxu0
    %861 = vdwg.mxu0
    %862 = vmatpush.bf16.msra.mxu0 %v647
    %863 = vmatpush.bf16.msra.mxu0 %v641
    %864 = vmatpush.bf16.msra.mxu0 %v635
    %865 = vmatpush.bf16.msra.mxu0 %v629
    %866 = vmatpush.bf16.msra.mxu0 %v623
    %867 = vmatpush.bf16.msra.mxu0 %v617
    %868 = vmatpush.bf16.msra.mxu0 %v611
    %869 = vmatpush.bf16.msra.mxu0 %v605
    %870 = vmatmul.bf16.gmra.mxu0 %v250
    %v871 = vpop.f32.mrf.mxu0
    %v872 = vadd.f32 %v859, %v871
    %v873 = vpop.f32.mrf.mxu0
    %874 = vdwg.mxu0
    %875 = vmatpush.bf16.msra.mxu0 %v600
    %876 = vmatpush.bf16.msra.mxu0 %v594
    %877 = vmatpush.bf16.msra.mxu0 %v588
    %878 = vmatpush.bf16.msra.mxu0 %v582
    %879 = vmatpush.bf16.msra.mxu0 %v576
    %880 = vmatpush.bf16.msra.mxu0 %v570
    %881 = vmatpush.bf16.msra.mxu0 %v564
    %882 = vmatpush.bf16.msra.mxu0 %v558
    %883 = vmatmul.bf16.gmra.mxu0 %v249
    %v884 = vpop.f32.mrf.mxu0
    %v885 = vadd.f32 %v258, %v884
    %v886 = vpop.f32.mrf.mxu0
    %887 = vdwg.mxu0
    %888 = vmatpush.bf16.msra.mxu0 %v648
    %889 = vmatpush.bf16.msra.mxu0 %v642
    %890 = vmatpush.bf16.msra.mxu0 %v636
    %891 = vmatpush.bf16.msra.mxu0 %v630
    %892 = vmatpush.bf16.msra.mxu0 %v624
    %893 = vmatpush.bf16.msra.mxu0 %v618
    %894 = vmatpush.bf16.msra.mxu0 %v612
    %895 = vmatpush.bf16.msra.mxu0 %v606
    %896 = vmatmul.bf16.gmra.mxu0 %v250
    %v897 = vpop.f32.mrf.mxu0
    %v898 = vadd.f32 %v885, %v897
    %v899 = vpop.f32.mrf.mxu0
    %900 = vdwg.mxu0
    %v901 = vld [vmem:[#allocation9 + $0x18] sm:$0xff]
    %v902 = vld [vmem:[#allocation9 + $0x20] sm:$0xff]
    %v903 = vld [vmem:[#allocation9 + $0x28] sm:$0xff]
    %v904 = vld [vmem:[#allocation9 + $0x70] sm:$0xff]
    %v905 = vld [vmem:[#allocation9 + $0x78] sm:$0xff]
    %v906 = vld [vmem:[#allocation9 + $0x80] sm:$0xff]
    %v907 = vld [vmem:[#allocation9 + $0xc8] sm:$0xff]
    %v908 = vld [vmem:[#allocation9 + $0xd0] sm:$0xff]
    %v909 = vld [vmem:[#allocation9 + $0xd8] sm:$0xff]
    %v910 = vld [vmem:[#allocation9 + $0x120] sm:$0xff]
    %v911 = vld [vmem:[#allocation9 + $0x128] sm:$0xff]
    %v912 = vld [vmem:[#allocation9 + $0x130] sm:$0xff]
    %v913 = vld [vmem:[#allocation9 + $0x178] sm:$0xff]
    %v914 = vld [vmem:[#allocation9 + $0x180] sm:$0xff]
    %v915 = vld [vmem:[#allocation9 + $0x188] sm:$0xff]
    %v916 = vld [vmem:[#allocation9 + $0x1d0] sm:$0xff]
    %v917 = vld [vmem:[#allocation9 + $0x1d8] sm:$0xff]
    %v918 = vld [vmem:[#allocation9 + $0x1e0] sm:$0xff]
    %v919 = vld [vmem:[#allocation9 + $0x228] sm:$0xff]
    %v920 = vld [vmem:[#allocation9 + $0x230] sm:$0xff]
    %v921 = vld [vmem:[#allocation9 + $0x238] sm:$0xff]
    %v922 = vld [vmem:[#allocation9 + $0x280] sm:$0xff]
    %v923 = vld [vmem:[#allocation9 + $0x288] sm:$0xff]
    %v924 = vld [vmem:[#allocation9 + $0x290] sm:$0xff]
    %v925 = vld [vmem:[#allocation9 + $0x2d8] sm:$0xff]
    %v926 = vld [vmem:[#allocation9 + $0x2e0] sm:$0xff]
    %v927 = vld [vmem:[#allocation9 + $0x2e8] sm:$0xff]
    %v928 = vld [vmem:[#allocation9 + $0x330] sm:$0xff]
    %v929 = vld [vmem:[#allocation9 + $0x338] sm:$0xff]
    %v930 = vld [vmem:[#allocation9 + $0x340] sm:$0xff]
    %v931 = vld [vmem:[#allocation9 + $0x388] sm:$0xff]
    %v932 = vld [vmem:[#allocation9 + $0x390] sm:$0xff]
    %v933 = vld [vmem:[#allocation9 + $0x398] sm:$0xff]
    %v934 = vld [vmem:[#allocation9 + $0x3e0] sm:$0xff]
    %v935 = vld [vmem:[#allocation9 + $0x3e8] sm:$0xff]
    %v936 = vld [vmem:[#allocation9 + $0x3f0] sm:$0xff]
    %v937 = vld [vmem:[#allocation9 + $0x438] sm:$0xff]
    %v938 = vld [vmem:[#allocation9 + $0x440] sm:$0xff]
    %v939 = vld [vmem:[#allocation9 + $0x448] sm:$0xff]
    %v940 = vld [vmem:[#allocation9 + $0x490] sm:$0xff]
    %v941 = vld [vmem:[#allocation9 + $0x498] sm:$0xff]
    %v942 = vld [vmem:[#allocation9 + $0x4a0] sm:$0xff]
    %v943 = vld [vmem:[#allocation9 + $0x4e8] sm:$0xff]
    %v944 = vld [vmem:[#allocation9 + $0x4f0] sm:$0xff]
    %v945 = vld [vmem:[#allocation9 + $0x4f8] sm:$0xff]
    %v946 = vld [vmem:[#allocation9 + $0x540] sm:$0xff]
    %v947 = vld [vmem:[#allocation9 + $0x548] sm:$0xff]
    %v948 = vld [vmem:[#allocation9 + $0x550] sm:$0xff]
    %v949 = vld [vmem:[#allocation9 + $0x598] sm:$0xff]
    %v950 = vld [vmem:[#allocation9 + $0x5a0] sm:$0xff]
    %v951 = vld [vmem:[#allocation9 + $0x5a8] sm:$0xff]
    %v952 = vld [vmem:[#allocation9 + $0x5f0] sm:$0xff]
    %v953 = vld [vmem:[#allocation9 + $0x5f8] sm:$0xff]
    %v954 = vld [vmem:[#allocation9 + $0x600] sm:$0xff]
    %v955 = vld [vmem:[#allocation9 + $0x648] sm:$0xff]
    %v956 = vld [vmem:[#allocation9 + $0x650] sm:$0xff]
    %v957 = vld [vmem:[#allocation9 + $0x658] sm:$0xff]
    %v958 = vld [vmem:[#allocation9 + $0x6a0] sm:$0xff]
    %v959 = vld [vmem:[#allocation9 + $0x6a8] sm:$0xff]
    %v960 = vld [vmem:[#allocation9 + $0x6b0] sm:$0xff]
    %v961 = vld [vmem:[#allocation9 + $0x6f8] sm:$0xff]
    %v962 = vld [vmem:[#allocation9 + $0x700] sm:$0xff]
    %v963 = vld [vmem:[#allocation9 + $0x708] sm:$0xff]
    %v964 = vld [vmem:[#allocation9 + $0x750] sm:$0xff]
    %v965 = vld [vmem:[#allocation9 + $0x758] sm:$0xff]
    %v966 = vld [vmem:[#allocation9 + $0x760] sm:$0xff]
    %v967 = vld [vmem:[#allocation9 + $0x7a8] sm:$0xff]
    %v968 = vld [vmem:[#allocation9 + $0x7b0] sm:$0xff]
    %v969 = vld [vmem:[#allocation9 + $0x7b8] sm:$0xff]
    %v970 = vld [vmem:[#allocation9 + $0x800] sm:$0xff]
    %v971 = vld [vmem:[#allocation9 + $0x808] sm:$0xff]
    %v972 = vld [vmem:[#allocation9 + $0x810] sm:$0xff]
    %v973 = vld [vmem:[#allocation9 + $0x858] sm:$0xff]
    %v974 = vld [vmem:[#allocation9 + $0x860] sm:$0xff]
    %v975 = vld [vmem:[#allocation9 + $0x868] sm:$0xff]
    %v976 = vld [vmem:[#allocation9 + $0x8b0] sm:$0xff]
    %v977 = vld [vmem:[#allocation9 + $0x8b8] sm:$0xff]
    %v978 = vld [vmem:[#allocation9 + $0x8c0] sm:$0xff]
    %v979 = vld [vmem:[#allocation9 + $0x908] sm:$0xff]
    %v980 = vld [vmem:[#allocation9 + $0x910] sm:$0xff]
    %v981 = vld [vmem:[#allocation9 + $0x918] sm:$0xff]
    %v982 = vld [vmem:[#allocation9 + $0x960] sm:$0xff]
    %v983 = vld [vmem:[#allocation9 + $0x968] sm:$0xff]
    %v984 = vld [vmem:[#allocation9 + $0x970] sm:$0xff]
    %v985 = vld [vmem:[#allocation9 + $0x9b8] sm:$0xff]
    %v986 = vld [vmem:[#allocation9 + $0x9c0] sm:$0xff]
    %v987 = vld [vmem:[#allocation9 + $0x9c8] sm:$0xff]
    %v988 = vld [vmem:[#allocation9 + $0xa10] sm:$0xff]
    %v989 = vld [vmem:[#allocation9 + $0xa18] sm:$0xff]
    %v990 = vld [vmem:[#allocation9 + $0xa20] sm:$0xff]
    %v991 = vld [vmem:[#allocation9 + $0xa68] sm:$0xff]
    %v992 = vld [vmem:[#allocation9 + $0xa70] sm:$0xff]
    %v993 = vld [vmem:[#allocation9 + $0xa78] sm:$0xff]
    %v994 = vld [vmem:[#allocation9 + $0xac0] sm:$0xff]
    %v995 = vld [vmem:[#allocation9 + $0xac8] sm:$0xff]
    %v996 = vld [vmem:[#allocation9 + $0xad0] sm:$0xff]
    %998 = vst [vmem:[#allocation1] ss:$4 sm:$0xff] %v152
    %v999 = vld.sshfl [vmem:[#allocation1] sm:$0xff pattern:$0x73625140]
    %v1000 = vld.sshfl [vmem:[#allocation1 + $0x8] sm:$0xff pattern:$0x73625140]
    %v1003 = vpack.c.bf16 %v999, %v999
    %v1004 = vpack.c.bf16 %v1000, %v1000
    %v1101 = vunpack.c.l.b16 %v901
    %v1102 = vunpack.c.h.b16 %v901
    %v1103 = vunpack.c.l.b16 %v902
    %v1104 = vunpack.c.h.b16 %v902
    %v1105 = vunpack.c.l.b16 %v903
    %v1106 = vunpack.c.h.b16 %v903
    %v1107 = vunpack.c.l.b16 %v904
    %v1108 = vunpack.c.h.b16 %v904
    %v1109 = vunpack.c.l.b16 %v905
    %v1110 = vunpack.c.h.b16 %v905
    %v1111 = vunpack.c.l.b16 %v906
    %v1112 = vunpack.c.h.b16 %v906
    %v1113 = vunpack.c.l.b16 %v907
    %v1114 = vunpack.c.h.b16 %v907
    %v1115 = vunpack.c.l.b16 %v908
    %v1116 = vunpack.c.h.b16 %v908
    %v1117 = vunpack.c.l.b16 %v909
    %v1118 = vunpack.c.h.b16 %v909
    %v1119 = vunpack.c.l.b16 %v910
    %v1120 = vunpack.c.h.b16 %v910
    %v1121 = vunpack.c.l.b16 %v911
    %v1122 = vunpack.c.h.b16 %v911
    %v1123 = vunpack.c.l.b16 %v912
    %v1124 = vunpack.c.h.b16 %v912
    %v1125 = vunpack.c.l.b16 %v913
    %v1126 = vunpack.c.h.b16 %v913
    %v1127 = vunpack.c.l.b16 %v914
    %v1128 = vunpack.c.h.b16 %v914
    %v1129 = vunpack.c.l.b16 %v915
    %v1130 = vunpack.c.h.b16 %v915
    %v1131 = vunpack.c.l.b16 %v916
    %v1132 = vunpack.c.h.b16 %v916
    %v1133 = vunpack.c.l.b16 %v917
    %v1134 = vunpack.c.h.b16 %v917
    %v1135 = vunpack.c.l.b16 %v918
    %v1136 = vunpack.c.h.b16 %v918
    %v1137 = vunpack.c.l.b16 %v919
    %v1138 = vunpack.c.h.b16 %v919
    %v1139 = vunpack.c.l.b16 %v920
    %v1140 = vunpack.c.h.b16 %v920
    %v1141 = vunpack.c.l.b16 %v921
    %v1142 = vunpack.c.h.b16 %v921
    %v1143 = vunpack.c.l.b16 %v922
    %v1144 = vunpack.c.h.b16 %v922
    %v1145 = vunpack.c.l.b16 %v923
    %v1146 = vunpack.c.h.b16 %v923
    %v1147 = vunpack.c.l.b16 %v924
    %v1148 = vunpack.c.h.b16 %v924
    %v1149 = vunpack.c.l.b16 %v925
    %v1150 = vunpack.c.h.b16 %v925
    %v1151 = vunpack.c.l.b16 %v926
    %v1152 = vunpack.c.h.b16 %v926
    %v1153 = vunpack.c.l.b16 %v927
    %v1154 = vunpack.c.h.b16 %v927
    %v1155 = vunpack.c.l.b16 %v928
    %v1156 = vunpack.c.h.b16 %v928
    %v1157 = vunpack.c.l.b16 %v929
    %v1158 = vunpack.c.h.b16 %v929
    %v1159 = vunpack.c.l.b16 %v930
    %v1160 = vunpack.c.h.b16 %v930
    %v1161 = vunpack.c.l.b16 %v931
    %v1162 = vunpack.c.h.b16 %v931
    %v1163 = vunpack.c.l.b16 %v932
    %v1164 = vunpack.c.h.b16 %v932
    %v1165 = vunpack.c.l.b16 %v933
    %v1166 = vunpack.c.h.b16 %v933
    %v1167 = vunpack.c.l.b16 %v934
    %v1168 = vunpack.c.h.b16 %v934
    %v1169 = vunpack.c.l.b16 %v935
    %v1170 = vunpack.c.h.b16 %v935
    %v1171 = vunpack.c.l.b16 %v936
    %v1172 = vunpack.c.h.b16 %v936
    %v1173 = vunpack.c.l.b16 %v937
    %v1174 = vunpack.c.h.b16 %v937
    %v1175 = vunpack.c.l.b16 %v938
    %v1176 = vunpack.c.h.b16 %v938
    %v1177 = vunpack.c.l.b16 %v939
    %v1178 = vunpack.c.h.b16 %v939
    %v1179 = vunpack.c.l.b16 %v940
    %v1180 = vunpack.c.h.b16 %v940
    %v1181 = vunpack.c.l.b16 %v941
    %v1182 = vunpack.c.h.b16 %v941
    %v1183 = vunpack.c.l.b16 %v942
    %v1184 = vunpack.c.h.b16 %v942
    %v1185 = vunpack.c.l.b16 %v943
    %v1186 = vunpack.c.h.b16 %v943
    %v1187 = vunpack.c.l.b16 %v944
    %v1188 = vunpack.c.h.b16 %v944
    %v1189 = vunpack.c.l.b16 %v945
    %v1190 = vunpack.c.h.b16 %v945
    %v1191 = vunpack.c.l.b16 %v946
    %v1192 = vunpack.c.h.b16 %v946
    %v1193 = vunpack.c.l.b16 %v947
    %v1194 = vunpack.c.h.b16 %v947
    %v1195 = vunpack.c.l.b16 %v948
    %v1196 = vunpack.c.h.b16 %v948
    %v1197 = vunpack.c.l.b16 %v949
    %v1198 = vunpack.c.h.b16 %v949
    %v1199 = vunpack.c.l.b16 %v950
    %v1200 = vunpack.c.h.b16 %v950
    %v1201 = vunpack.c.l.b16 %v951
    %v1202 = vunpack.c.h.b16 %v951
    %v1203 = vunpack.c.l.b16 %v952
    %v1204 = vunpack.c.h.b16 %v952
    %v1205 = vunpack.c.l.b16 %v953
    %v1206 = vunpack.c.h.b16 %v953
    %v1207 = vunpack.c.l.b16 %v954
    %v1208 = vunpack.c.h.b16 %v954
    %v1209 = vunpack.c.l.b16 %v955
    %v1210 = vunpack.c.h.b16 %v955
    %v1211 = vunpack.c.l.b16 %v956
    %v1212 = vunpack.c.h.b16 %v956
    %v1213 = vunpack.c.l.b16 %v957
    %v1214 = vunpack.c.h.b16 %v957
    %v1215 = vunpack.c.l.b16 %v958
    %v1216 = vunpack.c.h.b16 %v958
    %v1217 = vunpack.c.l.b16 %v959
    %v1218 = vunpack.c.h.b16 %v959
    %v1219 = vunpack.c.l.b16 %v960
    %v1220 = vunpack.c.h.b16 %v960
    %v1221 = vunpack.c.l.b16 %v961
    %v1222 = vunpack.c.h.b16 %v961
    %v1223 = vunpack.c.l.b16 %v962
    %v1224 = vunpack.c.h.b16 %v962
    %v1225 = vunpack.c.l.b16 %v963
    %v1226 = vunpack.c.h.b16 %v963
    %v1227 = vunpack.c.l.b16 %v964
    %v1228 = vunpack.c.h.b16 %v964
    %v1229 = vunpack.c.l.b16 %v965
    %v1230 = vunpack.c.h.b16 %v965
    %v1231 = vunpack.c.l.b16 %v966
    %v1232 = vunpack.c.h.b16 %v966
    %v1233 = vunpack.c.l.b16 %v967
    %v1234 = vunpack.c.h.b16 %v967
    %v1235 = vunpack.c.l.b16 %v968
    %v1236 = vunpack.c.h.b16 %v968
    %v1237 = vunpack.c.l.b16 %v969
    %v1238 = vunpack.c.h.b16 %v969
    %v1239 = vunpack.c.l.b16 %v970
    %v1240 = vunpack.c.h.b16 %v970
    %v1241 = vunpack.c.l.b16 %v971
    %v1242 = vunpack.c.h.b16 %v971
    %v1243 = vunpack.c.l.b16 %v972
    %v1244 = vunpack.c.h.b16 %v972
    %v1245 = vunpack.c.l.b16 %v973
    %v1246 = vunpack.c.h.b16 %v973
    %v1247 = vunpack.c.l.b16 %v974
    %v1248 = vunpack.c.h.b16 %v974
    %v1249 = vunpack.c.l.b16 %v975
    %v1250 = vunpack.c.h.b16 %v975
    %v1251 = vunpack.c.l.b16 %v976
    %v1252 = vunpack.c.h.b16 %v976
    %v1253 = vunpack.c.l.b16 %v977
    %v1254 = vunpack.c.h.b16 %v977
    %v1255 = vunpack.c.l.b16 %v978
    %v1256 = vunpack.c.h.b16 %v978
    %v1257 = vunpack.c.l.b16 %v979
    %v1258 = vunpack.c.h.b16 %v979
    %v1259 = vunpack.c.l.b16 %v980
    %v1260 = vunpack.c.h.b16 %v980
    %v1261 = vunpack.c.l.b16 %v981
    %v1262 = vunpack.c.h.b16 %v981
    %v1263 = vunpack.c.l.b16 %v982
    %v1264 = vunpack.c.h.b16 %v982
    %v1265 = vunpack.c.l.b16 %v983
    %v1266 = vunpack.c.h.b16 %v983
    %v1267 = vunpack.c.l.b16 %v984
    %v1268 = vunpack.c.h.b16 %v984
    %v1269 = vunpack.c.l.b16 %v985
    %v1270 = vunpack.c.h.b16 %v985
    %v1271 = vunpack.c.l.b16 %v986
    %v1272 = vunpack.c.h.b16 %v986
    %v1273 = vunpack.c.l.b16 %v987
    %v1274 = vunpack.c.h.b16 %v987
    %v1275 = vunpack.c.l.b16 %v988
    %v1276 = vunpack.c.h.b16 %v988
    %v1277 = vunpack.c.l.b16 %v989
    %v1278 = vunpack.c.h.b16 %v989
    %v1279 = vunpack.c.l.b16 %v990
    %v1280 = vunpack.c.h.b16 %v990
    %v1281 = vunpack.c.l.b16 %v991
    %v1282 = vunpack.c.h.b16 %v991
    %v1283 = vunpack.c.l.b16 %v992
    %v1284 = vunpack.c.h.b16 %v992
    %v1285 = vunpack.c.l.b16 %v993
    %v1286 = vunpack.c.h.b16 %v993
    %v1287 = vunpack.c.l.b16 %v994
    %v1288 = vunpack.c.h.b16 %v994
    %v1289 = vunpack.c.l.b16 %v995
    %v1290 = vunpack.c.h.b16 %v995
    %v1291 = vunpack.c.l.b16 %v996
    %v1292 = vunpack.c.h.b16 %v996
    %v1293 = vpack.c.b16 %v1107, %v1101
    %v1294 = vpack.c.b16 %v1108, %v1102
    %v1295 = vpack.c.b16 %v1109, %v1103
    %v1296 = vpack.c.b16 %v1110, %v1104
    %v1297 = vpack.c.b16 %v1111, %v1105
    %v1298 = vpack.c.b16 %v1112, %v1106
    %v1299 = vpack.c.b16 %v1119, %v1113
    %v1300 = vpack.c.b16 %v1120, %v1114
    %v1301 = vpack.c.b16 %v1121, %v1115
    %v1302 = vpack.c.b16 %v1122, %v1116
    %v1303 = vpack.c.b16 %v1123, %v1117
    %v1304 = vpack.c.b16 %v1124, %v1118
    %v1305 = vpack.c.b16 %v1131, %v1125
    %v1306 = vpack.c.b16 %v1132, %v1126
    %v1307 = vpack.c.b16 %v1133, %v1127
    %v1308 = vpack.c.b16 %v1134, %v1128
    %v1309 = vpack.c.b16 %v1135, %v1129
    %v1310 = vpack.c.b16 %v1136, %v1130
    %v1311 = vpack.c.b16 %v1143, %v1137
    %v1312 = vpack.c.b16 %v1144, %v1138
    %v1313 = vpack.c.b16 %v1145, %v1139
    %v1314 = vpack.c.b16 %v1146, %v1140
    %v1315 = vpack.c.b16 %v1147, %v1141
    %v1316 = vpack.c.b16 %v1148, %v1142
    %v1317 = vpack.c.b16 %v1155, %v1149
    %v1318 = vpack.c.b16 %v1156, %v1150
    %v1319 = vpack.c.b16 %v1157, %v1151
    %v1320 = vpack.c.b16 %v1158, %v1152
    %v1321 = vpack.c.b16 %v1159, %v1153
    %v1322 = vpack.c.b16 %v1160, %v1154
    %v1323 = vpack.c.b16 %v1167, %v1161
    %v1324 = vpack.c.b16 %v1168, %v1162
    %v1325 = vpack.c.b16 %v1169, %v1163
    %v1326 = vpack.c.b16 %v1170, %v1164
    %v1327 = vpack.c.b16 %v1171, %v1165
    %v1328 = vpack.c.b16 %v1172, %v1166
    %v1329 = vpack.c.b16 %v1179, %v1173
    %v1330 = vpack.c.b16 %v1180, %v1174
    %v1331 = vpack.c.b16 %v1181, %v1175
    %v1332 = vpack.c.b16 %v1182, %v1176
    %v1333 = vpack.c.b16 %v1183, %v1177
    %v1334 = vpack.c.b16 %v1184, %v1178
    %v1335 = vpack.c.b16 %v1191, %v1185
    %v1336 = vpack.c.b16 %v1192, %v1186
    %v1337 = vpack.c.b16 %v1193, %v1187
    %v1338 = vpack.c.b16 %v1194, %v1188
    %v1339 = vpack.c.b16 %v1195, %v1189
    %v1340 = vpack.c.b16 %v1196, %v1190
    %v1341 = vpack.c.b16 %v1203, %v1197
    %v1342 = vpack.c.b16 %v1204, %v1198
    %v1343 = vpack.c.b16 %v1205, %v1199
    %v1344 = vpack.c.b16 %v1206, %v1200
    %v1345 = vpack.c.b16 %v1207, %v1201
    %v1346 = vpack.c.b16 %v1208, %v1202
    %v1347 = vpack.c.b16 %v1215, %v1209
    %v1348 = vpack.c.b16 %v1216, %v1210
    %v1349 = vpack.c.b16 %v1217, %v1211
    %v1350 = vpack.c.b16 %v1218, %v1212
    %v1351 = vpack.c.b16 %v1219, %v1213
    %v1352 = vpack.c.b16 %v1220, %v1214
    %v1353 = vpack.c.b16 %v1227, %v1221
    %v1354 = vpack.c.b16 %v1228, %v1222
    %v1355 = vpack.c.b16 %v1229, %v1223
    %v1356 = vpack.c.b16 %v1230, %v1224
    %v1357 = vpack.c.b16 %v1231, %v1225
    %v1358 = vpack.c.b16 %v1232, %v1226
    %v1359 = vpack.c.b16 %v1239, %v1233
    %v1360 = vpack.c.b16 %v1240, %v1234
    %v1361 = vpack.c.b16 %v1241, %v1235
    %v1362 = vpack.c.b16 %v1242, %v1236
    %v1363 = vpack.c.b16 %v1243, %v1237
    %v1364 = vpack.c.b16 %v1244, %v1238
    %v1365 = vpack.c.b16 %v1251, %v1245
    %v1366 = vpack.c.b16 %v1252, %v1246
    %v1367 = vpack.c.b16 %v1253, %v1247
    %v1368 = vpack.c.b16 %v1254, %v1248
    %v1369 = vpack.c.b16 %v1255, %v1249
    %v1370 = vpack.c.b16 %v1256, %v1250
    %v1371 = vpack.c.b16 %v1263, %v1257
    %v1372 = vpack.c.b16 %v1264, %v1258
    %v1373 = vpack.c.b16 %v1265, %v1259
    %v1374 = vpack.c.b16 %v1266, %v1260
    %v1375 = vpack.c.b16 %v1267, %v1261
    %v1376 = vpack.c.b16 %v1268, %v1262
    %v1377 = vpack.c.b16 %v1275, %v1269
    %v1378 = vpack.c.b16 %v1276, %v1270
    %v1379 = vpack.c.b16 %v1277, %v1271
    %v1380 = vpack.c.b16 %v1278, %v1272
    %v1381 = vpack.c.b16 %v1279, %v1273
    %v1382 = vpack.c.b16 %v1280, %v1274
    %v1383 = vpack.c.b16 %v1287, %v1281
    %v1384 = vpack.c.b16 %v1288, %v1282
    %v1385 = vpack.c.b16 %v1289, %v1283
    %v1386 = vpack.c.b16 %v1290, %v1284
    %v1387 = vpack.c.b16 %v1291, %v1285
    %v1388 = vpack.c.b16 %v1292, %v1286
    %1485 = vmatpush.bf16.msra.mxu0 %v1335
    %1486 = vmatpush.bf16.msra.mxu0 %v1329
    %1487 = vmatpush.bf16.msra.mxu0 %v1323
    %1488 = vmatpush.bf16.msra.mxu0 %v1317
    %1489 = vmatpush.bf16.msra.mxu0 %v1311
    %1490 = vmatpush.bf16.msra.mxu0 %v1305
    %1491 = vmatpush.bf16.msra.mxu0 %v1299
    %1492 = vmatpush.bf16.msra.mxu0 %v1293
    %1493 = vmatmul.bf16.gmra.mxu0 %v1003
    %v1494 = vpop.f32.mrf.mxu0
    %v1495 = vadd.f32 0.0, %v1494
    %v1496 = vpop.f32.mrf.mxu0
    %1497 = vdwg.mxu0
    %1498 = vmatpush.bf16.msra.mxu0 %v1383
    %1499 = vmatpush.bf16.msra.mxu0 %v1377
    %1500 = vmatpush.bf16.msra.mxu0 %v1371
    %1501 = vmatpush.bf16.msra.mxu0 %v1365
    %1502 = vmatpush.bf16.msra.mxu0 %v1359
    %1503 = vmatpush.bf16.msra.mxu0 %v1353
    %1504 = vmatpush.bf16.msra.mxu0 %v1347
    %1505 = vmatpush.bf16.msra.mxu0 %v1341
    %1506 = vmatmul.bf16.gmra.mxu0 %v1004
    %v1507 = vpop.f32.mrf.mxu0
    %v1508 = vadd.f32 %v1495, %v1507
    %v1509 = vpop.f32.mrf.mxu0
    %1510 = vdwg.mxu0
    %1511 = vmatpush.bf16.msra.mxu0 %v1336
    %1512 = vmatpush.bf16.msra.mxu0 %v1330
    %1513 = vmatpush.bf16.msra.mxu0 %v1324
    %1514 = vmatpush.bf16.msra.mxu0 %v1318
    %1515 = vmatpush.bf16.msra.mxu0 %v1312
    %1516 = vmatpush.bf16.msra.mxu0 %v1306
    %1517 = vmatpush.bf16.msra.mxu0 %v1300
    %1518 = vmatpush.bf16.msra.mxu0 %v1294
    %1519 = vmatmul.bf16.gmra.mxu0 %v1003
    %v1520 = vpop.f32.mrf.mxu0
    %v1521 = vadd.f32 0.0, %v1520
    %v1522 = vpop.f32.mrf.mxu0
    %1523 = vdwg.mxu0
    %1524 = vmatpush.bf16.msra.mxu0 %v1384
    %1525 = vmatpush.bf16.msra.mxu0 %v1378
    %1526 = vmatpush.bf16.msra.mxu0 %v1372
    %1527 = vmatpush.bf16.msra.mxu0 %v1366
    %1528 = vmatpush.bf16.msra.mxu0 %v1360
    %1529 = vmatpush.bf16.msra.mxu0 %v1354
    %1530 = vmatpush.bf16.msra.mxu0 %v1348
    %1531 = vmatpush.bf16.msra.mxu0 %v1342
    %1532 = vmatmul.bf16.gmra.mxu0 %v1004
    %v1533 = vpop.f32.mrf.mxu0
    %v1534 = vadd.f32 %v1521, %v1533
    %v1535 = vpop.f32.mrf.mxu0
    %1536 = vdwg.mxu0
    %1537 = vmatpush.bf16.msra.mxu0 %v1337
    %1538 = vmatpush.bf16.msra.mxu0 %v1331
    %1539 = vmatpush.bf16.msra.mxu0 %v1325
    %1540 = vmatpush.bf16.msra.mxu0 %v1319
    %1541 = vmatpush.bf16.msra.mxu0 %v1313
    %1542 = vmatpush.bf16.msra.mxu0 %v1307
    %1543 = vmatpush.bf16.msra.mxu0 %v1301
    %1544 = vmatpush.bf16.msra.mxu0 %v1295
    %1545 = vmatmul.bf16.gmra.mxu0 %v1003
    %v1546 = vpop.f32.mrf.mxu0
    %v1547 = vadd.f32 0.0, %v1546
    %v1548 = vpop.f32.mrf.mxu0
    %1549 = vdwg.mxu0
    %1550 = vmatpush.bf16.msra.mxu0 %v1385
    %1551 = vmatpush.bf16.msra.mxu0 %v1379
    %1552 = vmatpush.bf16.msra.mxu0 %v1373
    %1553 = vmatpush.bf16.msra.mxu0 %v1367
    %1554 = vmatpush.bf16.msra.mxu0 %v1361
    %1555 = vmatpush.bf16.msra.mxu0 %v1355
    %1556 = vmatpush.bf16.msra.mxu0 %v1349
    %1557 = vmatpush.bf16.msra.mxu0 %v1343
    %1558 = vmatmul.bf16.gmra.mxu0 %v1004
    %v1559 = vpop.f32.mrf.mxu0
    %v1560 = vadd.f32 %v1547, %v1559
    %v1561 = vpop.f32.mrf.mxu0
    %1562 = vdwg.mxu0
    %1563 = vmatpush.bf16.msra.mxu0 %v1338
    %1564 = vmatpush.bf16.msra.mxu0 %v1332
    %1565 = vmatpush.bf16.msra.mxu0 %v1326
    %1566 = vmatpush.bf16.msra.mxu0 %v1320
    %1567 = vmatpush.bf16.msra.mxu0 %v1314
    %1568 = vmatpush.bf16.msra.mxu0 %v1308
    %1569 = vmatpush.bf16.msra.mxu0 %v1302
    %1570 = vmatpush.bf16.msra.mxu0 %v1296
    %1571 = vmatmul.bf16.gmra.mxu0 %v1003
    %v1572 = vpop.f32.mrf.mxu0
    %v1573 = vadd.f32 0.0, %v1572
    %v1574 = vpop.f32.mrf.mxu0
    %1575 = vdwg.mxu0
    %1576 = vmatpush.bf16.msra.mxu0 %v1386
    %1577 = vmatpush.bf16.msra.mxu0 %v1380
    %1578 = vmatpush.bf16.msra.mxu0 %v1374
    %1579 = vmatpush.bf16.msra.mxu0 %v1368
    %1580 = vmatpush.bf16.msra.mxu0 %v1362
    %1581 = vmatpush.bf16.msra.mxu0 %v1356
    %1582 = vmatpush.bf16.msra.mxu0 %v1350
    %1583 = vmatpush.bf16.msra.mxu0 %v1344
    %1584 = vmatmul.bf16.gmra.mxu0 %v1004
    %v1585 = vpop.f32.mrf.mxu0
    %v1586 = vadd.f32 %v1573, %v1585
    %v1587 = vpop.f32.mrf.mxu0
    %1588 = vdwg.mxu0
    %1589 = vmatpush.bf16.msra.mxu0 %v1339
    %1590 = vmatpush.bf16.msra.mxu0 %v1333
    %1591 = vmatpush.bf16.msra.mxu0 %v1327
    %1592 = vmatpush.bf16.msra.mxu0 %v1321
    %1593 = vmatpush.bf16.msra.mxu0 %v1315
    %1594 = vmatpush.bf16.msra.mxu0 %v1309
    %1595 = vmatpush.bf16.msra.mxu0 %v1303
    %1596 = vmatpush.bf16.msra.mxu0 %v1297
    %1597 = vmatmul.bf16.gmra.mxu0 %v1003
    %v1598 = vpop.f32.mrf.mxu0
    %v1599 = vadd.f32 0.0, %v1598
    %v1600 = vpop.f32.mrf.mxu0
    %1601 = vdwg.mxu0
    %1602 = vmatpush.bf16.msra.mxu0 %v1387
    %1603 = vmatpush.bf16.msra.mxu0 %v1381
    %1604 = vmatpush.bf16.msra.mxu0 %v1375
    %1605 = vmatpush.bf16.msra.mxu0 %v1369
    %1606 = vmatpush.bf16.msra.mxu0 %v1363
    %1607 = vmatpush.bf16.msra.mxu0 %v1357
    %1608 = vmatpush.bf16.msra.mxu0 %v1351
    %1609 = vmatpush.bf16.msra.mxu0 %v1345
    %1610 = vmatmul.bf16.gmra.mxu0 %v1004
    %v1611 = vpop.f32.mrf.mxu0
    %v1612 = vadd.f32 %v1599, %v1611
    %v1613 = vpop.f32.mrf.mxu0
    %1614 = vdwg.mxu0
    %1615 = vmatpush.bf16.msra.mxu0 %v1340
    %1616 = vmatpush.bf16.msra.mxu0 %v1334
    %1617 = vmatpush.bf16.msra.mxu0 %v1328
    %1618 = vmatpush.bf16.msra.mxu0 %v1322
    %1619 = vmatpush.bf16.msra.mxu0 %v1316
    %1620 = vmatpush.bf16.msra.mxu0 %v1310
    %1621 = vmatpush.bf16.msra.mxu0 %v1304
    %1622 = vmatpush.bf16.msra.mxu0 %v1298
    %1623 = vmatmul.bf16.gmra.mxu0 %v1003
    %v1624 = vpop.f32.mrf.mxu0
    %v1625 = vadd.f32 0.0, %v1624
    %v1626 = vpop.f32.mrf.mxu0
    %1627 = vdwg.mxu0
    %1628 = vmatpush.bf16.msra.mxu0 %v1388
    %1629 = vmatpush.bf16.msra.mxu0 %v1382
    %1630 = vmatpush.bf16.msra.mxu0 %v1376
    %1631 = vmatpush.bf16.msra.mxu0 %v1370
    %1632 = vmatpush.bf16.msra.mxu0 %v1364
    %1633 = vmatpush.bf16.msra.mxu0 %v1358
    %1634 = vmatpush.bf16.msra.mxu0 %v1352
    %1635 = vmatpush.bf16.msra.mxu0 %v1346
    %1636 = vmatmul.bf16.gmra.mxu0 %v1004
    %v1637 = vpop.f32.mrf.mxu0
    %v1638 = vadd.f32 %v1625, %v1637
    %v1639 = vpop.f32.mrf.mxu0
    %1640 = vdwg.mxu0
    %v1641 = vadd.f32 %v768, %v1508
    %v1642 = vadd.f32 %v794, %v1534
    %v1643 = vxor.u32 %v1641, 2147483648
    %v1644 = vxor.u32 %v1642, 2147483648
    %v1645 = vmul.f32 %v1643, 1.442695
    %v1646 = vpow.pop %v1645
    %v1647 = vmul.f32 %v1644, 1.442695
    %v1648 = vpow.pop %v1647
    %v1649 = vadd.f32 %v1646, 1.0
    %v1650 = vadd.f32 %v1648, 1.0
    %v1651 = vrcp.pop %v1649
    %v1652 = vmul.f32 %v1649, %v1651
    %v1653 = vsub.f32 1.0, %v1652
    %v1654 = vmul.f32 %v1651, %v1653
    %v1655 = vadd.f32 %v1651, %v1654
    %vm1656 = vweird.f32 %v1649
    %vm1657 = vweird.f32 %v1651
    %vm1658 = vmor %vm1656, %vm1657
    %v1659 = vsel %vm1658, %v1651, %v1655
    %v1660 = vand.u32 2147483647, %v1649
    %vm1661 = vcmp.eq.f32.partialorder %v1660, 8.507059e+37
    %v1662 = vand.u32 %v1649, 2147483648
    %v1663 = vor.u32 1.1754944e-38, %v1662
    %v1664 = vsel %vm1661, %v1663, %v1659
    %v1665 = vmul.f32 1.0, %v1664
    %v1666 = vrcp.pop %v1650
    %v1667 = vmul.f32 %v1650, %v1666
    %v1668 = vsub.f32 1.0, %v1667
    %v1669 = vmul.f32 %v1666, %v1668
    %v1670 = vadd.f32 %v1666, %v1669
    %vm1671 = vweird.f32 %v1650
    %vm1672 = vweird.f32 %v1666
    %vm1673 = vmor %vm1671, %vm1672
    %v1674 = vsel %vm1673, %v1666, %v1670
    %v1675 = vand.u32 2147483647, %v1650
    %vm1676 = vcmp.eq.f32.partialorder %v1675, 8.507059e+37
    %v1677 = vand.u32 %v1650, 2147483648
    %v1678 = vor.u32 1.1754944e-38, %v1677
    %v1679 = vsel %vm1676, %v1678, %v1674
    %v1680 = vmul.f32 1.0, %v1679
    %v1681 = vadd.f32 %v820, %v1560
    %v1682 = vadd.f32 %v846, %v1586
    %v1683 = vxor.u32 %v1681, 2147483648
    %v1684 = vxor.u32 %v1682, 2147483648
    %v1685 = vmul.f32 %v1683, 1.442695
    %v1686 = vpow.pop %v1685
    %v1687 = vmul.f32 %v1684, 1.442695
    %v1688 = vpow.pop %v1687
    %v1689 = vadd.f32 %v1686, 1.0
    %v1690 = vadd.f32 %v1688, 1.0
    %v1691 = vrcp.pop %v1689
    %v1692 = vmul.f32 %v1689, %v1691
    %v1693 = vsub.f32 1.0, %v1692
    %v1694 = vmul.f32 %v1691, %v1693
    %v1695 = vadd.f32 %v1691, %v1694
    %vm1696 = vweird.f32 %v1689
    %vm1697 = vweird.f32 %v1691
    %vm1698 = vmor %vm1696, %vm1697
    %v1699 = vsel %vm1698, %v1691, %v1695
    %v1700 = vand.u32 2147483647, %v1689
    %vm1701 = vcmp.eq.f32.partialorder %v1700, 8.507059e+37
    %v1702 = vand.u32 %v1689, 2147483648
    %v1703 = vor.u32 1.1754944e-38, %v1702
    %v1704 = vsel %vm1701, %v1703, %v1699
    %v1705 = vmul.f32 1.0, %v1704
    %v1706 = vrcp.pop %v1690
    %v1707 = vmul.f32 %v1690, %v1706
    %v1708 = vsub.f32 1.0, %v1707
    %v1709 = vmul.f32 %v1706, %v1708
    %v1710 = vadd.f32 %v1706, %v1709
    %vm1711 = vweird.f32 %v1690
    %vm1712 = vweird.f32 %v1706
    %vm1713 = vmor %vm1711, %vm1712
    %v1714 = vsel %vm1713, %v1706, %v1710
    %v1715 = vand.u32 2147483647, %v1690
    %vm1716 = vcmp.eq.f32.partialorder %v1715, 8.507059e+37
    %v1717 = vand.u32 %v1690, 2147483648
    %v1718 = vor.u32 1.1754944e-38, %v1717
    %v1719 = vsel %vm1716, %v1718, %v1714
    %v1720 = vmul.f32 1.0, %v1719
    %v1721 = vld [vmem:[#allocation11 + $0x8] sm:$0x3]
    %v1723 = vperm.slane %v1721, 0
    %v1724 = vperm.slane %v1721, 1
    %v1727 = vadd.f32 %v1612, %v1723
    %v1728 = vadd.f32 %v1638, %v1724
    %v1729 = vmul.f32 %v1665, %v1727
    %v1730 = vmul.f32 %v1680, %v1728
    %v1731 = vadd.f32 %v872, %v1729
    %v1732 = vadd.f32 %v898, %v1730
    %v1733 = vtanh.pop %v1731
    %v1734 = vtanh.pop %v1732
    %v1735 = vsub.f32 1.0, %v1705
    %v1736 = vsub.f32 1.0, %v1720
    %v1737 = vmul.f32 %v1735, %v1733
    %v1738 = vmul.f32 %v1736, %v1734
    %1739 = vst [vmem:[#allocation1] ss:$4 sm:$0xff] %v152
    %v1740 = vld.sshfl [vmem:[#allocation1] sm:$0xff pattern:$0x73625140]
    %v1741 = vld.sshfl [vmem:[#allocation1 + $0x8] sm:$0xff pattern:$0x73625140]
    %v1744 = vmul.f32 %v1705, %v1740
    %v1745 = vmul.f32 %v1720, %v1741
    %v1746 = vadd.f32 %v1737, %v1744
    %v1747 = vadd.f32 %v1738, %v1745
    %v1750 = vrot.slane %v1747, 6
    %vm1751 = vcmask 1041408
    %v1752 = vsel %vm1751, %v1746, %v1750
    %1754 = vst [vmem:[#allocation2] sm:$0xf] %v1752
    %v1755 = vld [vmem:[#allocation9 + $0x30] sm:$0xff]
    %v1756 = vld [vmem:[#allocation9 + $0x38] sm:$0xff]
    %v1757 = vld [vmem:[#allocation9 + $0x88] sm:$0xff]
    %v1758 = vld [vmem:[#allocation9 + $0x90] sm:$0xff]
    %v1759 = vld [vmem:[#allocation9 + $0xe0] sm:$0xff]
    %v1760 = vld [vmem:[#allocation9 + $0xe8] sm:$0xff]
    %v1761 = vld [vmem:[#allocation9 + $0x138] sm:$0xff]
    %v1762 = vld [vmem:[#allocation9 + $0x140] sm:$0xff]
    %v1763 = vld [vmem:[#allocation9 + $0x190] sm:$0xff]
    %v1764 = vld [vmem:[#allocation9 + $0x198] sm:$0xff]
    %v1765 = vld [vmem:[#allocation9 + $0x1e8] sm:$0xff]
    %v1766 = vld [vmem:[#allocation9 + $0x1f0] sm:$0xff]
    %v1767 = vld [vmem:[#allocation9 + $0x240] sm:$0xff]
    %v1768 = vld [vmem:[#allocation9 + $0x248] sm:$0xff]
    %v1769 = vld [vmem:[#allocation9 + $0x298] sm:$0xff]
    %v1770 = vld [vmem:[#allocation9 + $0x2a0] sm:$0xff]
    %v1771 = vld [vmem:[#allocation9 + $0x2f0] sm:$0xff]
    %v1772 = vld [vmem:[#allocation9 + $0x2f8] sm:$0xff]
    %v1773 = vld [vmem:[#allocation9 + $0x348] sm:$0xff]
    %v1774 = vld [vmem:[#allocation9 + $0x350] sm:$0xff]
    %v1775 = vld [vmem:[#allocation9 + $0x3a0] sm:$0xff]
    %v1776 = vld [vmem:[#allocation9 + $0x3a8] sm:$0xff]
    %v1777 = vld [vmem:[#allocation9 + $0x3f8] sm:$0xff]
    %v1778 = vld [vmem:[#allocation9 + $0x400] sm:$0xff]
    %v1779 = vld [vmem:[#allocation9 + $0x450] sm:$0xff]
    %v1780 = vld [vmem:[#allocation9 + $0x458] sm:$0xff]
    %v1781 = vld [vmem:[#allocation9 + $0x4a8] sm:$0xff]
    %v1782 = vld [vmem:[#allocation9 + $0x4b0] sm:$0xff]
    %v1783 = vld [vmem:[#allocation9 + $0x500] sm:$0xff]
    %v1784 = vld [vmem:[#allocation9 + $0x508] sm:$0xff]
    %v1785 = vld [vmem:[#allocation9 + $0x558] sm:$0xff]
    %v1786 = vld [vmem:[#allocation9 + $0x560] sm:$0xff]
    %v1787 = vld [vmem:[#allocation9 + $0x5b0] sm:$0xff]
    %v1788 = vld [vmem:[#allocation9 + $0x5b8] sm:$0xff]
    %v1789 = vld [vmem:[#allocation9 + $0x608] sm:$0xff]
    %v1790 = vld [vmem:[#allocation9 + $0x610] sm:$0xff]
    %v1791 = vld [vmem:[#allocation9 + $0x660] sm:$0xff]
    %v1792 = vld [vmem:[#allocation9 + $0x668] sm:$0xff]
    %v1793 = vld [vmem:[#allocation9 + $0x6b8] sm:$0xff]
    %v1794 = vld [vmem:[#allocation9 + $0x6c0] sm:$0xff]
    %v1795 = vld [vmem:[#allocation9 + $0x710] sm:$0xff]
    %v1796 = vld [vmem:[#allocation9 + $0x718] sm:$0xff]
    %v1797 = vld [vmem:[#allocation9 + $0x768] sm:$0xff]
    %v1798 = vld [vmem:[#allocation9 + $0x770] sm:$0xff]
    %v1799 = vld [vmem:[#allocation9 + $0x7c0] sm:$0xff]
    %v1800 = vld [vmem:[#allocation9 + $0x7c8] sm:$0xff]
    %v1801 = vld [vmem:[#allocation9 + $0x818] sm:$0xff]
    %v1802 = vld [vmem:[#allocation9 + $0x820] sm:$0xff]
    %v1803 = vld [vmem:[#allocation9 + $0x870] sm:$0xff]
    %v1804 = vld [vmem:[#allocation9 + $0x878] sm:$0xff]
    %v1805 = vld [vmem:[#allocation9 + $0x8c8] sm:$0xff]
    %v1806 = vld [vmem:[#allocation9 + $0x8d0] sm:$0xff]
    %v1807 = vld [vmem:[#allocation9 + $0x920] sm:$0xff]
    %v1808 = vld [vmem:[#allocation9 + $0x928] sm:$0xff]
    %v1809 = vld [vmem:[#allocation9 + $0x978] sm:$0xff]
    %v1810 = vld [vmem:[#allocation9 + $0x980] sm:$0xff]
    %v1811 = vld [vmem:[#allocation9 + $0x9d0] sm:$0xff]
    %v1812 = vld [vmem:[#allocation9 + $0x9d8] sm:$0xff]
    %v1813 = vld [vmem:[#allocation9 + $0xa28] sm:$0xff]
    %v1814 = vld [vmem:[#allocation9 + $0xa30] sm:$0xff]
    %v1815 = vld [vmem:[#allocation9 + $0xa80] sm:$0xff]
    %v1816 = vld [vmem:[#allocation9 + $0xa88] sm:$0xff]
    %v1817 = vld [vmem:[#allocation9 + $0xad8] sm:$0xff]
    %v1818 = vld [vmem:[#allocation9 + $0xae0] sm:$0xff]
    %v1819 = vpack.c.bf16 %v1746, %v1746
    %v1820 = vpack.c.bf16 %v1747, %v1747
    %v1821 = vld [vmem:[#allocation11 + $0xa] sm:$0xf]
    %v1823 = vperm.slane %v1821, 0
    %v1824 = vperm.slane %v1821, 1
    %v1825 = vperm.slane %v1821, 2
    %v1826 = vperm.slane %v1821, 3
    %v1895 = vunpack.c.l.b16 %v1755
    %v1896 = vunpack.c.h.b16 %v1755
    %v1897 = vunpack.c.l.b16 %v1756
    %v1898 = vunpack.c.h.b16 %v1756
    %v1899 = vunpack.c.l.b16 %v1757
    %v1900 = vunpack.c.h.b16 %v1757
    %v1901 = vunpack.c.l.b16 %v1758
    %v1902 = vunpack.c.h.b16 %v1758
    %v1903 = vunpack.c.l.b16 %v1759
    %v1904 = vunpack.c.h.b16 %v1759
    %v1905 = vunpack.c.l.b16 %v1760
    %v1906 = vunpack.c.h.b16 %v1760
    %v1907 = vunpack.c.l.b16 %v1761
    %v1908 = vunpack.c.h.b16 %v1761
    %v1909 = vunpack.c.l.b16 %v1762
    %v1910 = vunpack.c.h.b16 %v1762
    %v1911 = vunpack.c.l.b16 %v1763
    %v1912 = vunpack.c.h.b16 %v1763
    %v1913 = vunpack.c.l.b16 %v1764
    %v1914 = vunpack.c.h.b16 %v1764
    %v1915 = vunpack.c.l.b16 %v1765
    %v1916 = vunpack.c.h.b16 %v1765
    %v1917 = vunpack.c.l.b16 %v1766
    %v1918 = vunpack.c.h.b16 %v1766
    %v1919 = vunpack.c.l.b16 %v1767
    %v1920 = vunpack.c.h.b16 %v1767
    %v1921 = vunpack.c.l.b16 %v1768
    %v1922 = vunpack.c.h.b16 %v1768
    %v1923 = vunpack.c.l.b16 %v1769
    %v1924 = vunpack.c.h.b16 %v1769
    %v1925 = vunpack.c.l.b16 %v1770
    %v1926 = vunpack.c.h.b16 %v1770
    %v1927 = vunpack.c.l.b16 %v1771
    %v1928 = vunpack.c.h.b16 %v1771
    %v1929 = vunpack.c.l.b16 %v1772
    %v1930 = vunpack.c.h.b16 %v1772
    %v1931 = vunpack.c.l.b16 %v1773
    %v1932 = vunpack.c.h.b16 %v1773
    %v1933 = vunpack.c.l.b16 %v1774
    %v1934 = vunpack.c.h.b16 %v1774
    %v1935 = vunpack.c.l.b16 %v1775
    %v1936 = vunpack.c.h.b16 %v1775
    %v1937 = vunpack.c.l.b16 %v1776
    %v1938 = vunpack.c.h.b16 %v1776
    %v1939 = vunpack.c.l.b16 %v1777
    %v1940 = vunpack.c.h.b16 %v1777
    %v1941 = vunpack.c.l.b16 %v1778
    %v1942 = vunpack.c.h.b16 %v1778
    %v1943 = vunpack.c.l.b16 %v1779
    %v1944 = vunpack.c.h.b16 %v1779
    %v1945 = vunpack.c.l.b16 %v1780
    %v1946 = vunpack.c.h.b16 %v1780
    %v1947 = vunpack.c.l.b16 %v1781
    %v1948 = vunpack.c.h.b16 %v1781
    %v1949 = vunpack.c.l.b16 %v1782
    %v1950 = vunpack.c.h.b16 %v1782
    %v1951 = vunpack.c.l.b16 %v1783
    %v1952 = vunpack.c.h.b16 %v1783
    %v1953 = vunpack.c.l.b16 %v1784
    %v1954 = vunpack.c.h.b16 %v1784
    %v1955 = vunpack.c.l.b16 %v1785
    %v1956 = vunpack.c.h.b16 %v1785
    %v1957 = vunpack.c.l.b16 %v1786
    %v1958 = vunpack.c.h.b16 %v1786
    %v1959 = vunpack.c.l.b16 %v1787
    %v1960 = vunpack.c.h.b16 %v1787
    %v1961 = vunpack.c.l.b16 %v1788
    %v1962 = vunpack.c.h.b16 %v1788
    %v1963 = vunpack.c.l.b16 %v1789
    %v1964 = vunpack.c.h.b16 %v1789
    %v1965 = vunpack.c.l.b16 %v1790
    %v1966 = vunpack.c.h.b16 %v1790
    %v1967 = vunpack.c.l.b16 %v1791
    %v1968 = vunpack.c.h.b16 %v1791
    %v1969 = vunpack.c.l.b16 %v1792
    %v1970 = vunpack.c.h.b16 %v1792
    %v1971 = vunpack.c.l.b16 %v1793
    %v1972 = vunpack.c.h.b16 %v1793
    %v1973 = vunpack.c.l.b16 %v1794
    %v1974 = vunpack.c.h.b16 %v1794
    %v1975 = vunpack.c.l.b16 %v1795
    %v1976 = vunpack.c.h.b16 %v1795
    %v1977 = vunpack.c.l.b16 %v1796
    %v1978 = vunpack.c.h.b16 %v1796
    %v1979 = vunpack.c.l.b16 %v1797
    %v1980 = vunpack.c.h.b16 %v1797
    %v1981 = vunpack.c.l.b16 %v1798
    %v1982 = vunpack.c.h.b16 %v1798
    %v1983 = vunpack.c.l.b16 %v1799
    %v1984 = vunpack.c.h.b16 %v1799
    %v1985 = vunpack.c.l.b16 %v1800
    %v1986 = vunpack.c.h.b16 %v1800
    %v1987 = vunpack.c.l.b16 %v1801
    %v1988 = vunpack.c.h.b16 %v1801
    %v1989 = vunpack.c.l.b16 %v1802
    %v1990 = vunpack.c.h.b16 %v1802
    %v1991 = vunpack.c.l.b16 %v1803
    %v1992 = vunpack.c.h.b16 %v1803
    %v1993 = vunpack.c.l.b16 %v1804
    %v1994 = vunpack.c.h.b16 %v1804
    %v1995 = vunpack.c.l.b16 %v1805
    %v1996 = vunpack.c.h.b16 %v1805
    %v1997 = vunpack.c.l.b16 %v1806
    %v1998 = vunpack.c.h.b16 %v1806
    %v1999 = vunpack.c.l.b16 %v1807
    %v2000 = vunpack.c.h.b16 %v1807
    %v2001 = vunpack.c.l.b16 %v1808
    %v2002 = vunpack.c.h.b16 %v1808
    %v2003 = vunpack.c.l.b16 %v1809
    %v2004 = vunpack.c.h.b16 %v1809
    %v2005 = vunpack.c.l.b16 %v1810
    %v2006 = vunpack.c.h.b16 %v1810
    %v2007 = vunpack.c.l.b16 %v1811
    %v2008 = vunpack.c.h.b16 %v1811
    %v2009 = vunpack.c.l.b16 %v1812
    %v2010 = vunpack.c.h.b16 %v1812
    %v2011 = vunpack.c.l.b16 %v1813
    %v2012 = vunpack.c.h.b16 %v1813
    %v2013 = vunpack.c.l.b16 %v1814
    %v2014 = vunpack.c.h.b16 %v1814
    %v2015 = vunpack.c.l.b16 %v1815
    %v2016 = vunpack.c.h.b16 %v1815
    %v2017 = vunpack.c.l.b16 %v1816
    %v2018 = vunpack.c.h.b16 %v1816
    %v2019 = vunpack.c.l.b16 %v1817
    %v2020 = vunpack.c.h.b16 %v1817
    %v2021 = vunpack.c.l.b16 %v1818
    %v2022 = vunpack.c.h.b16 %v1818
    %v2023 = vpack.c.b16 %v1899, %v1895
    %v2024 = vpack.c.b16 %v1900, %v1896
    %v2025 = vpack.c.b16 %v1901, %v1897
    %v2026 = vpack.c.b16 %v1902, %v1898
    %v2027 = vpack.c.b16 %v1907, %v1903
    %v2028 = vpack.c.b16 %v1908, %v1904
    %v2029 = vpack.c.b16 %v1909, %v1905
    %v2030 = vpack.c.b16 %v1910, %v1906
    %v2031 = vpack.c.b16 %v1915, %v1911
    %v2032 = vpack.c.b16 %v1916, %v1912
    %v2033 = vpack.c.b16 %v1917, %v1913
    %v2034 = vpack.c.b16 %v1918, %v1914
    %v2035 = vpack.c.b16 %v1923, %v1919
    %v2036 = vpack.c.b16 %v1924, %v1920
    %v2037 = vpack.c.b16 %v1925, %v1921
    %v2038 = vpack.c.b16 %v1926, %v1922
    %v2039 = vpack.c.b16 %v1931, %v1927
    %v2040 = vpack.c.b16 %v1932, %v1928
    %v2041 = vpack.c.b16 %v1933, %v1929
    %v2042 = vpack.c.b16 %v1934, %v1930
    %v2043 = vpack.c.b16 %v1939, %v1935
    %v2044 = vpack.c.b16 %v1940, %v1936
    %v2045 = vpack.c.b16 %v1941, %v1937
    %v2046 = vpack.c.b16 %v1942, %v1938
    %v2047 = vpack.c.b16 %v1947, %v1943
    %v2048 = vpack.c.b16 %v1948, %v1944
    %v2049 = vpack.c.b16 %v1949, %v1945
    %v2050 = vpack.c.b16 %v1950, %v1946
    %v2051 = vpack.c.b16 %v1955, %v1951
    %v2052 = vpack.c.b16 %v1956, %v1952
    %v2053 = vpack.c.b16 %v1957, %v1953
    %v2054 = vpack.c.b16 %v1958, %v1954
    %v2055 = vpack.c.b16 %v1963, %v1959
    %v2056 = vpack.c.b16 %v1964, %v1960
    %v2057 = vpack.c.b16 %v1965, %v1961
    %v2058 = vpack.c.b16 %v1966, %v1962
    %v2059 = vpack.c.b16 %v1971, %v1967
    %v2060 = vpack.c.b16 %v1972, %v1968
    %v2061 = vpack.c.b16 %v1973, %v1969
    %v2062 = vpack.c.b16 %v1974, %v1970
    %v2063 = vpack.c.b16 %v1979, %v1975
    %v2064 = vpack.c.b16 %v1980, %v1976
    %v2065 = vpack.c.b16 %v1981, %v1977
    %v2066 = vpack.c.b16 %v1982, %v1978
    %v2067 = vpack.c.b16 %v1987, %v1983
    %v2068 = vpack.c.b16 %v1988, %v1984
    %v2069 = vpack.c.b16 %v1989, %v1985
    %v2070 = vpack.c.b16 %v1990, %v1986
    %v2071 = vpack.c.b16 %v1995, %v1991
    %v2072 = vpack.c.b16 %v1996, %v1992
    %v2073 = vpack.c.b16 %v1997, %v1993
    %v2074 = vpack.c.b16 %v1998, %v1994
    %v2075 = vpack.c.b16 %v2003, %v1999
    %v2076 = vpack.c.b16 %v2004, %v2000
    %v2077 = vpack.c.b16 %v2005, %v2001
    %v2078 = vpack.c.b16 %v2006, %v2002
    %v2079 = vpack.c.b16 %v2011, %v2007
    %v2080 = vpack.c.b16 %v2012, %v2008
    %v2081 = vpack.c.b16 %v2013, %v2009
    %v2082 = vpack.c.b16 %v2014, %v2010
    %v2083 = vpack.c.b16 %v2019, %v2015
    %v2084 = vpack.c.b16 %v2020, %v2016
    %v2085 = vpack.c.b16 %v2021, %v2017
    %v2086 = vpack.c.b16 %v2022, %v2018
    %2151 = vmatpush.bf16.msra.mxu0 %v2051
    %2152 = vmatpush.bf16.msra.mxu0 %v2047
    %2153 = vmatpush.bf16.msra.mxu0 %v2043
    %2154 = vmatpush.bf16.msra.mxu0 %v2039
    %2155 = vmatpush.bf16.msra.mxu0 %v2035
    %2156 = vmatpush.bf16.msra.mxu0 %v2031
    %2157 = vmatpush.bf16.msra.mxu0 %v2027
    %2158 = vmatpush.bf16.msra.mxu0 %v2023
    %2159 = vmatmul.bf16.gmra.mxu0 %v1819
    %v2160 = vpop.f32.mrf.mxu0
    %v2161 = vadd.f32 %v1823, %v2160
    %v2162 = vpop.f32.mrf.mxu0
    %2163 = vdwg.mxu0
    %2164 = vmatpush.bf16.msra.mxu0 %v2083
    %2165 = vmatpush.bf16.msra.mxu0 %v2079
    %2166 = vmatpush.bf16.msra.mxu0 %v2075
    %2167 = vmatpush.bf16.msra.mxu0 %v2071
    %2168 = vmatpush.bf16.msra.mxu0 %v2067
    %2169 = vmatpush.bf16.msra.mxu0 %v2063
    %2170 = vmatpush.bf16.msra.mxu0 %v2059
    %2171 = vmatpush.bf16.msra.mxu0 %v2055
    %2172 = vmatmul.bf16.gmra.mxu0 %v1820
    %v2173 = vpop.f32.mrf.mxu0
    %v2174 = vadd.f32 %v2161, %v2173
    %v2175 = vpop.f32.mrf.mxu0
    %2176 = vdwg.mxu0
    %2177 = vmatpush.bf16.msra.mxu0 %v2052
    %2178 = vmatpush.bf16.msra.mxu0 %v2048
    %2179 = vmatpush.bf16.msra.mxu0 %v2044
    %2180 = vmatpush.bf16.msra.mxu0 %v2040
    %2181 = vmatpush.bf16.msra.mxu0 %v2036
    %2182 = vmatpush.bf16.msra.mxu0 %v2032
    %2183 = vmatpush.bf16.msra.mxu0 %v2028
    %2184 = vmatpush.bf16.msra.mxu0 %v2024
    %2185 = vmatmul.bf16.gmra.mxu0 %v1819
    %v2186 = vpop.f32.mrf.mxu0
    %v2187 = vadd.f32 %v1824, %v2186
    %v2188 = vpop.f32.mrf.mxu0
    %2189 = vdwg.mxu0
    %2190 = vmatpush.bf16.msra.mxu0 %v2084
    %2191 = vmatpush.bf16.msra.mxu0 %v2080
    %2192 = vmatpush.bf16.msra.mxu0 %v2076
    %2193 = vmatpush.bf16.msra.mxu0 %v2072
    %2194 = vmatpush.bf16.msra.mxu0 %v2068
    %2195 = vmatpush.bf16.msra.mxu0 %v2064
    %2196 = vmatpush.bf16.msra.mxu0 %v2060
    %2197 = vmatpush.bf16.msra.mxu0 %v2056
    %2198 = vmatmul.bf16.gmra.mxu0 %v1820
    %v2199 = vpop.f32.mrf.mxu0
    %v2200 = vadd.f32 %v2187, %v2199
    %v2201 = vpop.f32.mrf.mxu0
    %2202 = vdwg.mxu0
    %2203 = vmatpush.bf16.msra.mxu0 %v2053
    %2204 = vmatpush.bf16.msra.mxu0 %v2049
    %2205 = vmatpush.bf16.msra.mxu0 %v2045
    %2206 = vmatpush.bf16.msra.mxu0 %v2041
    %2207 = vmatpush.bf16.msra.mxu0 %v2037
    %2208 = vmatpush.bf16.msra.mxu0 %v2033
    %2209 = vmatpush.bf16.msra.mxu0 %v2029
    %2210 = vmatpush.bf16.msra.mxu0 %v2025
    %2211 = vmatmul.bf16.gmra.mxu0 %v1819
    %v2212 = vpop.f32.mrf.mxu0
    %v2213 = vadd.f32 %v1825, %v2212
    %v2214 = vpop.f32.mrf.mxu0
    %2215 = vdwg.mxu0
    %2216 = vmatpush.bf16.msra.mxu0 %v2085
    %2217 = vmatpush.bf16.msra.mxu0 %v2081
    %2218 = vmatpush.bf16.msra.mxu0 %v2077
    %2219 = vmatpush.bf16.msra.mxu0 %v2073
    %2220 = vmatpush.bf16.msra.mxu0 %v2069
    %2221 = vmatpush.bf16.msra.mxu0 %v2065
    %2222 = vmatpush.bf16.msra.mxu0 %v2061
    %2223 = vmatpush.bf16.msra.mxu0 %v2057
    %2224 = vmatmul.bf16.gmra.mxu0 %v1820
    %v2225 = vpop.f32.mrf.mxu0
    %v2226 = vadd.f32 %v2213, %v2225
    %v2227 = vpop.f32.mrf.mxu0
    %2228 = vdwg.mxu0
    %2229 = vmatpush.bf16.msra.mxu0 %v2054
    %2230 = vmatpush.bf16.msra.mxu0 %v2050
    %2231 = vmatpush.bf16.msra.mxu0 %v2046
    %2232 = vmatpush.bf16.msra.mxu0 %v2042
    %2233 = vmatpush.bf16.msra.mxu0 %v2038
    %2234 = vmatpush.bf16.msra.mxu0 %v2034
    %2235 = vmatpush.bf16.msra.mxu0 %v2030
    %2236 = vmatpush.bf16.msra.mxu0 %v2026
    %2237 = vmatmul.bf16.gmra.mxu0 %v1819
    %v2238 = vpop.f32.mrf.mxu0
    %v2239 = vadd.f32 %v1826, %v2238
    %v2240 = vpop.f32.mrf.mxu0
    %2241 = vdwg.mxu0
    %2242 = vmatpush.bf16.msra.mxu0 %v2086
    %2243 = vmatpush.bf16.msra.mxu0 %v2082
    %2244 = vmatpush.bf16.msra.mxu0 %v2078
    %2245 = vmatpush.bf16.msra.mxu0 %v2074
    %2246 = vmatpush.bf16.msra.mxu0 %v2070
    %2247 = vmatpush.bf16.msra.mxu0 %v2066
    %2248 = vmatpush.bf16.msra.mxu0 %v2062
    %2249 = vmatpush.bf16.msra.mxu0 %v2058
    %2250 = vmatmul.bf16.gmra.mxu0 %v1820
    %v2251 = vpop.f32.mrf.mxu0
    %v2252 = vadd.f32 %v2239, %v2251
    %v2253 = vpop.f32.mrf.mxu0
    %2254 = vdwg.mxu0
    %v2255 = vmax.f32 %v2174, 0.0
    %v2256 = vmax.f32 %v2200, 0.0
    %v2257 = vmax.f32 %v2226, 0.0
    %v2258 = vmax.f32 %v2252, 0.0
    %v2259 = vld [vmem:[#allocation9 + $0x40] sm:$0xff]
    %v2260 = vld [vmem:[#allocation9 + $0x98] sm:$0xff]
    %v2261 = vld [vmem:[#allocation9 + $0xf0] sm:$0xff]
    %v2262 = vld [vmem:[#allocation9 + $0x148] sm:$0xff]
    %v2263 = vld [vmem:[#allocation9 + $0x1a0] sm:$0xff]
    %v2264 = vld [vmem:[#allocation9 + $0x1f8] sm:$0xff]
    %v2265 = vld [vmem:[#allocation9 + $0x250] sm:$0xff]
    %v2266 = vld [vmem:[#allocation9 + $0x2a8] sm:$0xff]
    %v2267 = vld [vmem:[#allocation9 + $0x300] sm:$0xff]
    %v2268 = vld [vmem:[#allocation9 + $0x358] sm:$0xff]
    %v2269 = vld [vmem:[#allocation9 + $0x3b0] sm:$0xff]
    %v2270 = vld [vmem:[#allocation9 + $0x408] sm:$0xff]
    %v2271 = vld [vmem:[#allocation9 + $0x460] sm:$0xff]
    %v2272 = vld [vmem:[#allocation9 + $0x4b8] sm:$0xff]
    %v2273 = vld [vmem:[#allocation9 + $0x510] sm:$0xff]
    %v2274 = vld [vmem:[#allocation9 + $0x568] sm:$0xff]
    %v2275 = vld [vmem:[#allocation9 + $0x5c0] sm:$0xff]
    %v2276 = vld [vmem:[#allocation9 + $0x618] sm:$0xff]
    %v2277 = vld [vmem:[#allocation9 + $0x670] sm:$0xff]
    %v2278 = vld [vmem:[#allocation9 + $0x6c8] sm:$0xff]
    %v2279 = vld [vmem:[#allocation9 + $0x720] sm:$0xff]
    %v2280 = vld [vmem:[#allocation9 + $0x778] sm:$0xff]
    %v2281 = vld [vmem:[#allocation9 + $0x7d0] sm:$0xff]
    %v2282 = vld [vmem:[#allocation9 + $0x828] sm:$0xff]
    %v2283 = vld [vmem:[#allocation9 + $0x880] sm:$0xff]
    %v2284 = vld [vmem:[#allocation9 + $0x8d8] sm:$0xff]
    %v2285 = vld [vmem:[#allocation9 + $0x930] sm:$0xff]
    %v2286 = vld [vmem:[#allocation9 + $0x988] sm:$0xff]
    %v2287 = vld [vmem:[#allocation9 + $0x9e0] sm:$0xff]
    %v2288 = vld [vmem:[#allocation9 + $0xa38] sm:$0xff]
    %v2289 = vld [vmem:[#allocation9 + $0xa90] sm:$0xff]
    %v2290 = vld [vmem:[#allocation9 + $0xae8] sm:$0xff]
    %v2291 = vpack.c.bf16 %v2255, %v2255
    %v2292 = vpack.c.bf16 %v2256, %v2256
    %v2293 = vld [vmem:[#allocation11 + $0xe] sm:$0x3]
    %v2295 = vperm.slane %v2293, 0
    %v2296 = vperm.slane %v2293, 1
    %v2331 = vunpack.c.l.b16 %v2259
    %v2332 = vunpack.c.h.b16 %v2259
    %v2333 = vunpack.c.l.b16 %v2260
    %v2334 = vunpack.c.h.b16 %v2260
    %v2335 = vunpack.c.l.b16 %v2261
    %v2336 = vunpack.c.h.b16 %v2261
    %v2337 = vunpack.c.l.b16 %v2262
    %v2338 = vunpack.c.h.b16 %v2262
    %v2339 = vunpack.c.l.b16 %v2263
    %v2340 = vunpack.c.h.b16 %v2263
    %v2341 = vunpack.c.l.b16 %v2264
    %v2342 = vunpack.c.h.b16 %v2264
    %v2343 = vunpack.c.l.b16 %v2265
    %v2344 = vunpack.c.h.b16 %v2265
    %v2345 = vunpack.c.l.b16 %v2266
    %v2346 = vunpack.c.h.b16 %v2266
    %v2347 = vunpack.c.l.b16 %v2267
    %v2348 = vunpack.c.h.b16 %v2267
    %v2349 = vunpack.c.l.b16 %v2268
    %v2350 = vunpack.c.h.b16 %v2268
    %v2351 = vunpack.c.l.b16 %v2269
    %v2352 = vunpack.c.h.b16 %v2269
    %v2353 = vunpack.c.l.b16 %v2270
    %v2354 = vunpack.c.h.b16 %v2270
    %v2355 = vunpack.c.l.b16 %v2271
    %v2356 = vunpack.c.h.b16 %v2271
    %v2357 = vunpack.c.l.b16 %v2272
    %v2358 = vunpack.c.h.b16 %v2272
    %v2359 = vunpack.c.l.b16 %v2273
    %v2360 = vunpack.c.h.b16 %v2273
    %v2361 = vunpack.c.l.b16 %v2274
    %v2362 = vunpack.c.h.b16 %v2274
    %v2363 = vunpack.c.l.b16 %v2275
    %v2364 = vunpack.c.h.b16 %v2275
    %v2365 = vunpack.c.l.b16 %v2276
    %v2366 = vunpack.c.h.b16 %v2276
    %v2367 = vunpack.c.l.b16 %v2277
    %v2368 = vunpack.c.h.b16 %v2277
    %v2369 = vunpack.c.l.b16 %v2278
    %v2370 = vunpack.c.h.b16 %v2278
    %v2371 = vunpack.c.l.b16 %v2279
    %v2372 = vunpack.c.h.b16 %v2279
    %v2373 = vunpack.c.l.b16 %v2280
    %v2374 = vunpack.c.h.b16 %v2280
    %v2375 = vunpack.c.l.b16 %v2281
    %v2376 = vunpack.c.h.b16 %v2281
    %v2377 = vunpack.c.l.b16 %v2282
    %v2378 = vunpack.c.h.b16 %v2282
    %v2379 = vunpack.c.l.b16 %v2283
    %v2380 = vunpack.c.h.b16 %v2283
    %v2381 = vunpack.c.l.b16 %v2284
    %v2382 = vunpack.c.h.b16 %v2284
    %v2383 = vunpack.c.l.b16 %v2285
    %v2384 = vunpack.c.h.b16 %v2285
    %v2385 = vunpack.c.l.b16 %v2286
    %v2386 = vunpack.c.h.b16 %v2286
    %v2387 = vunpack.c.l.b16 %v2287
    %v2388 = vunpack.c.h.b16 %v2287
    %v2389 = vunpack.c.l.b16 %v2288
    %v2390 = vunpack.c.h.b16 %v2288
    %v2391 = vunpack.c.l.b16 %v2289
    %v2392 = vunpack.c.h.b16 %v2289
    %v2393 = vunpack.c.l.b16 %v2290
    %v2394 = vunpack.c.h.b16 %v2290
    %v2395 = vpack.c.b16 %v2333, %v2331
    %v2396 = vpack.c.b16 %v2334, %v2332
    %v2397 = vpack.c.b16 %v2337, %v2335
    %v2398 = vpack.c.b16 %v2338, %v2336
    %v2399 = vpack.c.b16 %v2341, %v2339
    %v2400 = vpack.c.b16 %v2342, %v2340
    %v2401 = vpack.c.b16 %v2345, %v2343
    %v2402 = vpack.c.b16 %v2346, %v2344
    %v2403 = vpack.c.b16 %v2349, %v2347
    %v2404 = vpack.c.b16 %v2350, %v2348
    %v2405 = vpack.c.b16 %v2353, %v2351
    %v2406 = vpack.c.b16 %v2354, %v2352
    %v2407 = vpack.c.b16 %v2357, %v2355
    %v2408 = vpack.c.b16 %v2358, %v2356
    %v2409 = vpack.c.b16 %v2361, %v2359
    %v2410 = vpack.c.b16 %v2362, %v2360
    %v2411 = vpack.c.b16 %v2365, %v2363
    %v2412 = vpack.c.b16 %v2366, %v2364
    %v2413 = vpack.c.b16 %v2369, %v2367
    %v2414 = vpack.c.b16 %v2370, %v2368
    %v2415 = vpack.c.b16 %v2373, %v2371
    %v2416 = vpack.c.b16 %v2374, %v2372
    %v2417 = vpack.c.b16 %v2377, %v2375
    %v2418 = vpack.c.b16 %v2378, %v2376
    %v2419 = vpack.c.b16 %v2381, %v2379
    %v2420 = vpack.c.b16 %v2382, %v2380
    %v2421 = vpack.c.b16 %v2385, %v2383
    %v2422 = vpack.c.b16 %v2386, %v2384
    %v2423 = vpack.c.b16 %v2389, %v2387
    %v2424 = vpack.c.b16 %v2390, %v2388
    %v2425 = vpack.c.b16 %v2393, %v2391
    %v2426 = vpack.c.b16 %v2394, %v2392
    %2459 = vmatpush.bf16.msra.mxu0 %v2409
    %2460 = vmatpush.bf16.msra.mxu0 %v2407
    %2461 = vmatpush.bf16.msra.mxu0 %v2405
    %2462 = vmatpush.bf16.msra.mxu0 %v2403
    %2463 = vmatpush.bf16.msra.mxu0 %v2401
    %2464 = vmatpush.bf16.msra.mxu0 %v2399
    %2465 = vmatpush.bf16.msra.mxu0 %v2397
    %2466 = vmatpush.bf16.msra.mxu0 %v2395
    %2467 = vmatmul.bf16.gmra.mxu0 %v2291
    %v2468 = vpop.f32.mrf.mxu0
    %v2469 = vadd.f32 %v2295, %v2468
    %v2470 = vpop.f32.mrf.mxu0
    %2471 = vdwg.mxu0
    %2472 = vmatpush.bf16.msra.mxu0 %v2425
    %2473 = vmatpush.bf16.msra.mxu0 %v2423
    %2474 = vmatpush.bf16.msra.mxu0 %v2421
    %2475 = vmatpush.bf16.msra.mxu0 %v2419
    %2476 = vmatpush.bf16.msra.mxu0 %v2417
    %2477 = vmatpush.bf16.msra.mxu0 %v2415
    %2478 = vmatpush.bf16.msra.mxu0 %v2413
    %2479 = vmatpush.bf16.msra.mxu0 %v2411
    %2480 = vmatmul.bf16.gmra.mxu0 %v2292
    %v2481 = vpop.f32.mrf.mxu0
    %v2482 = vadd.f32 %v2469, %v2481
    %v2483 = vpop.f32.mrf.mxu0
    %2484 = vdwg.mxu0
    %2485 = vmatpush.bf16.msra.mxu0 %v2410
    %2486 = vmatpush.bf16.msra.mxu0 %v2408
    %2487 = vmatpush.bf16.msra.mxu0 %v2406
    %2488 = vmatpush.bf16.msra.mxu0 %v2404
    %2489 = vmatpush.bf16.msra.mxu0 %v2402
    %2490 = vmatpush.bf16.msra.mxu0 %v2400
    %2491 = vmatpush.bf16.msra.mxu0 %v2398
    %2492 = vmatpush.bf16.msra.mxu0 %v2396
    %2493 = vmatmul.bf16.gmra.mxu0 %v2291
    %v2494 = vpop.f32.mrf.mxu0
    %v2495 = vadd.f32 %v2296, %v2494
    %v2496 = vpop.f32.mrf.mxu0
    %2497 = vdwg.mxu0
    %2498 = vmatpush.bf16.msra.mxu0 %v2426
    %2499 = vmatpush.bf16.msra.mxu0 %v2424
    %2500 = vmatpush.bf16.msra.mxu0 %v2422
    %2501 = vmatpush.bf16.msra.mxu0 %v2420
    %2502 = vmatpush.bf16.msra.mxu0 %v2418
    %2503 = vmatpush.bf16.msra.mxu0 %v2416
    %2504 = vmatpush.bf16.msra.mxu0 %v2414
    %2505 = vmatpush.bf16.msra.mxu0 %v2412
    %2506 = vmatmul.bf16.gmra.mxu0 %v2292
    %v2507 = vpop.f32.mrf.mxu0
    %v2508 = vadd.f32 %v2495, %v2507
    %v2509 = vpop.f32.mrf.mxu0
    %2510 = vdwg.mxu0
    %v2511 = vmax.f32 %v2482, 0.0
    %v2512 = vmax.f32 %v2508, 0.0
    %v2513 = vld [vmem:[#allocation9 + $0x48] sm:$0xff]
    %v2514 = vld [vmem:[#allocation9 + $0xa0] sm:$0xff]
    %v2515 = vld [vmem:[#allocation9 + $0xf8] sm:$0xff]
    %v2516 = vld [vmem:[#allocation9 + $0x150] sm:$0xff]
    %v2517 = vld [vmem:[#allocation9 + $0x1a8] sm:$0xff]
    %v2518 = vld [vmem:[#allocation9 + $0x200] sm:$0xff]
    %v2519 = vld [vmem:[#allocation9 + $0x258] sm:$0xff]
    %v2520 = vld [vmem:[#allocation9 + $0x2b0] sm:$0xff]
    %v2521 = vld [vmem:[#allocation9 + $0x308] sm:$0xff]
    %v2522 = vld [vmem:[#allocation9 + $0x360] sm:$0xff]
    %v2523 = vld [vmem:[#allocation9 + $0x3b8] sm:$0xff]
    %v2524 = vld [vmem:[#allocation9 + $0x410] sm:$0xff]
    %v2525 = vld [vmem:[#allocation9 + $0x468] sm:$0xff]
    %v2526 = vld [vmem:[#allocation9 + $0x4c0] sm:$0xff]
    %v2527 = vld [vmem:[#allocation9 + $0x518] sm:$0xff]
    %v2528 = vld [vmem:[#allocation9 + $0x570] sm:$0xff]
    %v2529 = vld [vmem:[#allocation9 + $0x5c8] sm:$0xff]
    %v2530 = vld [vmem:[#allocation9 + $0x620] sm:$0xff]
    %v2531 = vld [vmem:[#allocation9 + $0x678] sm:$0xff]
    %v2532 = vld [vmem:[#allocation9 + $0x6d0] sm:$0xff]
    %v2533 = vld [vmem:[#allocation9 + $0x728] sm:$0xff]
    %v2534 = vld [vmem:[#allocation9 + $0x780] sm:$0xff]
    %v2535 = vld [vmem:[#allocation9 + $0x7d8] sm:$0xff]
    %v2536 = vld [vmem:[#allocation9 + $0x830] sm:$0xff]
    %v2537 = vld [vmem:[#allocation9 + $0x888] sm:$0xff]
    %v2538 = vld [vmem:[#allocation9 + $0x8e0] sm:$0xff]
    %v2539 = vld [vmem:[#allocation9 + $0x938] sm:$0xff]
    %v2540 = vld [vmem:[#allocation9 + $0x990] sm:$0xff]
    %v2541 = vld [vmem:[#allocation9 + $0x9e8] sm:$0xff]
    %v2542 = vld [vmem:[#allocation9 + $0xa40] sm:$0xff]
    %v2543 = vld [vmem:[#allocation9 + $0xa98] sm:$0xff]
    %v2544 = vld [vmem:[#allocation9 + $0xaf0] sm:$0xff]
    %v2545 = vpack.c.bf16 %v2257, %v2257
    %v2546 = vpack.c.bf16 %v2258, %v2258
    %v2547 = vld [vmem:[#allocation11 + $0x10] sm:$0x3]
    %v2549 = vperm.slane %v2547, 0
    %v2550 = vperm.slane %v2547, 1
    %v2585 = vunpack.c.l.b16 %v2513
    %v2586 = vunpack.c.h.b16 %v2513
    %v2587 = vunpack.c.l.b16 %v2514
    %v2588 = vunpack.c.h.b16 %v2514
    %v2589 = vunpack.c.l.b16 %v2515
    %v2590 = vunpack.c.h.b16 %v2515
    %v2591 = vunpack.c.l.b16 %v2516
    %v2592 = vunpack.c.h.b16 %v2516
    %v2593 = vunpack.c.l.b16 %v2517
    %v2594 = vunpack.c.h.b16 %v2517
    %v2595 = vunpack.c.l.b16 %v2518
    %v2596 = vunpack.c.h.b16 %v2518
    %v2597 = vunpack.c.l.b16 %v2519
    %v2598 = vunpack.c.h.b16 %v2519
    %v2599 = vunpack.c.l.b16 %v2520
    %v2600 = vunpack.c.h.b16 %v2520
    %v2601 = vunpack.c.l.b16 %v2521
    %v2602 = vunpack.c.h.b16 %v2521
    %v2603 = vunpack.c.l.b16 %v2522
    %v2604 = vunpack.c.h.b16 %v2522
    %v2605 = vunpack.c.l.b16 %v2523
    %v2606 = vunpack.c.h.b16 %v2523
    %v2607 = vunpack.c.l.b16 %v2524
    %v2608 = vunpack.c.h.b16 %v2524
    %v2609 = vunpack.c.l.b16 %v2525
    %v2610 = vunpack.c.h.b16 %v2525
    %v2611 = vunpack.c.l.b16 %v2526
    %v2612 = vunpack.c.h.b16 %v2526
    %v2613 = vunpack.c.l.b16 %v2527
    %v2614 = vunpack.c.h.b16 %v2527
    %v2615 = vunpack.c.l.b16 %v2528
    %v2616 = vunpack.c.h.b16 %v2528
    %v2617 = vunpack.c.l.b16 %v2529
    %v2618 = vunpack.c.h.b16 %v2529
    %v2619 = vunpack.c.l.b16 %v2530
    %v2620 = vunpack.c.h.b16 %v2530
    %v2621 = vunpack.c.l.b16 %v2531
    %v2622 = vunpack.c.h.b16 %v2531
    %v2623 = vunpack.c.l.b16 %v2532
    %v2624 = vunpack.c.h.b16 %v2532
    %v2625 = vunpack.c.l.b16 %v2533
    %v2626 = vunpack.c.h.b16 %v2533
    %v2627 = vunpack.c.l.b16 %v2534
    %v2628 = vunpack.c.h.b16 %v2534
    %v2629 = vunpack.c.l.b16 %v2535
    %v2630 = vunpack.c.h.b16 %v2535
    %v2631 = vunpack.c.l.b16 %v2536
    %v2632 = vunpack.c.h.b16 %v2536
    %v2633 = vunpack.c.l.b16 %v2537
    %v2634 = vunpack.c.h.b16 %v2537
    %v2635 = vunpack.c.l.b16 %v2538
    %v2636 = vunpack.c.h.b16 %v2538
    %v2637 = vunpack.c.l.b16 %v2539
    %v2638 = vunpack.c.h.b16 %v2539
    %v2639 = vunpack.c.l.b16 %v2540
    %v2640 = vunpack.c.h.b16 %v2540
    %v2641 = vunpack.c.l.b16 %v2541
    %v2642 = vunpack.c.h.b16 %v2541
    %v2643 = vunpack.c.l.b16 %v2542
    %v2644 = vunpack.c.h.b16 %v2542
    %v2645 = vunpack.c.l.b16 %v2543
    %v2646 = vunpack.c.h.b16 %v2543
    %v2647 = vunpack.c.l.b16 %v2544
    %v2648 = vunpack.c.h.b16 %v2544
    %v2649 = vpack.c.b16 %v2587, %v2585
    %v2650 = vpack.c.b16 %v2588, %v2586
    %v2651 = vpack.c.b16 %v2591, %v2589
    %v2652 = vpack.c.b16 %v2592, %v2590
    %v2653 = vpack.c.b16 %v2595, %v2593
    %v2654 = vpack.c.b16 %v2596, %v2594
    %v2655 = vpack.c.b16 %v2599, %v2597
    %v2656 = vpack.c.b16 %v2600, %v2598
    %v2657 = vpack.c.b16 %v2603, %v2601
    %v2658 = vpack.c.b16 %v2604, %v2602
    %v2659 = vpack.c.b16 %v2607, %v2605
    %v2660 = vpack.c.b16 %v2608, %v2606
    %v2661 = vpack.c.b16 %v2611, %v2609
    %v2662 = vpack.c.b16 %v2612, %v2610
    %v2663 = vpack.c.b16 %v2615, %v2613
    %v2664 = vpack.c.b16 %v2616, %v2614
    %v2665 = vpack.c.b16 %v2619, %v2617
    %v2666 = vpack.c.b16 %v2620, %v2618
    %v2667 = vpack.c.b16 %v2623, %v2621
    %v2668 = vpack.c.b16 %v2624, %v2622
    %v2669 = vpack.c.b16 %v2627, %v2625
    %v2670 = vpack.c.b16 %v2628, %v2626
    %v2671 = vpack.c.b16 %v2631, %v2629
    %v2672 = vpack.c.b16 %v2632, %v2630
    %v2673 = vpack.c.b16 %v2635, %v2633
    %v2674 = vpack.c.b16 %v2636, %v2634
    %v2675 = vpack.c.b16 %v2639, %v2637
    %v2676 = vpack.c.b16 %v2640, %v2638
    %v2677 = vpack.c.b16 %v2643, %v2641
    %v2678 = vpack.c.b16 %v2644, %v2642
    %v2679 = vpack.c.b16 %v2647, %v2645
    %v2680 = vpack.c.b16 %v2648, %v2646
    %2713 = vmatpush.bf16.msra.mxu0 %v2663
    %2714 = vmatpush.bf16.msra.mxu0 %v2661
    %2715 = vmatpush.bf16.msra.mxu0 %v2659
    %2716 = vmatpush.bf16.msra.mxu0 %v2657
    %2717 = vmatpush.bf16.msra.mxu0 %v2655
    %2718 = vmatpush.bf16.msra.mxu0 %v2653
    %2719 = vmatpush.bf16.msra.mxu0 %v2651
    %2720 = vmatpush.bf16.msra.mxu0 %v2649
    %2721 = vmatmul.bf16.gmra.mxu0 %v2545
    %v2722 = vpop.f32.mrf.mxu0
    %v2723 = vadd.f32 %v2549, %v2722
    %v2724 = vpop.f32.mrf.mxu0
    %2725 = vdwg.mxu0
    %2726 = vmatpush.bf16.msra.mxu0 %v2679
    %2727 = vmatpush.bf16.msra.mxu0 %v2677
    %2728 = vmatpush.bf16.msra.mxu0 %v2675
    %2729 = vmatpush.bf16.msra.mxu0 %v2673
    %2730 = vmatpush.bf16.msra.mxu0 %v2671
    %2731 = vmatpush.bf16.msra.mxu0 %v2669
    %2732 = vmatpush.bf16.msra.mxu0 %v2667
    %2733 = vmatpush.bf16.msra.mxu0 %v2665
    %2734 = vmatmul.bf16.gmra.mxu0 %v2546
    %v2735 = vpop.f32.mrf.mxu0
    %v2736 = vadd.f32 %v2723, %v2735
    %v2737 = vpop.f32.mrf.mxu0
    %2738 = vdwg.mxu0
    %2739 = vmatpush.bf16.msra.mxu0 %v2664
    %2740 = vmatpush.bf16.msra.mxu0 %v2662
    %2741 = vmatpush.bf16.msra.mxu0 %v2660
    %2742 = vmatpush.bf16.msra.mxu0 %v2658
    %2743 = vmatpush.bf16.msra.mxu0 %v2656
    %2744 = vmatpush.bf16.msra.mxu0 %v2654
    %2745 = vmatpush.bf16.msra.mxu0 %v2652
    %2746 = vmatpush.bf16.msra.mxu0 %v2650
    %2747 = vmatmul.bf16.gmra.mxu0 %v2545
    %v2748 = vpop.f32.mrf.mxu0
    %v2749 = vadd.f32 %v2550, %v2748
    %v2750 = vpop.f32.mrf.mxu0
    %2751 = vdwg.mxu0
    %2752 = vmatpush.bf16.msra.mxu0 %v2680
    %2753 = vmatpush.bf16.msra.mxu0 %v2678
    %2754 = vmatpush.bf16.msra.mxu0 %v2676
    %2755 = vmatpush.bf16.msra.mxu0 %v2674
    %2756 = vmatpush.bf16.msra.mxu0 %v2672
    %2757 = vmatpush.bf16.msra.mxu0 %v2670
    %2758 = vmatpush.bf16.msra.mxu0 %v2668
    %2759 = vmatpush.bf16.msra.mxu0 %v2666
    %2760 = vmatmul.bf16.gmra.mxu0 %v2546
    %v2761 = vpop.f32.mrf.mxu0
    %v2762 = vadd.f32 %v2749, %v2761
    %v2763 = vpop.f32.mrf.mxu0
    %2764 = vdwg.mxu0
    %v2765 = vmax.f32 %v2736, 0.0
    %v2766 = vmax.f32 %v2762, 0.0
    %v2769 = vrot.slane %v2765, 6
    %v2770 = vrot.slane %v2766, 6
    %v2773 = vsel %vm1751, %v2511, %v2769
    %v2774 = vsel %vm1751, %v2512, %v2770
    %v2775 = vld [vmem:[#allocation9 + $0x50] sm:$0xff]
    %v2776 = vld [vmem:[#allocation9 + $0xa8] sm:$0xff]
    %v2777 = vld [vmem:[#allocation9 + $0x100] sm:$0xff]
    %v2778 = vld [vmem:[#allocation9 + $0x158] sm:$0xff]
    %v2779 = vld [vmem:[#allocation9 + $0x1b0] sm:$0xff]
    %v2780 = vld [vmem:[#allocation9 + $0x208] sm:$0xff]
    %v2781 = vld [vmem:[#allocation9 + $0x260] sm:$0xff]
    %v2782 = vld [vmem:[#allocation9 + $0x2b8] sm:$0xff]
    %v2783 = vld [vmem:[#allocation9 + $0x310] sm:$0xff]
    %v2784 = vld [vmem:[#allocation9 + $0x368] sm:$0xff]
    %v2785 = vld [vmem:[#allocation9 + $0x3c0] sm:$0xff]
    %v2786 = vld [vmem:[#allocation9 + $0x418] sm:$0xff]
    %v2787 = vld [vmem:[#allocation9 + $0x470] sm:$0xff]
    %v2788 = vld [vmem:[#allocation9 + $0x4c8] sm:$0xff]
    %v2789 = vld [vmem:[#allocation9 + $0x520] sm:$0xff]
    %v2790 = vld [vmem:[#allocation9 + $0x578] sm:$0xff]
    %v2791 = vld [vmem:[#allocation9 + $0x5d0] sm:$0xff]
    %v2792 = vld [vmem:[#allocation9 + $0x628] sm:$0xff]
    %v2793 = vld [vmem:[#allocation9 + $0x680] sm:$0xff]
    %v2794 = vld [vmem:[#allocation9 + $0x6d8] sm:$0xff]
    %v2795 = vld [vmem:[#allocation9 + $0x730] sm:$0xff]
    %v2796 = vld [vmem:[#allocation9 + $0x788] sm:$0xff]
    %v2797 = vld [vmem:[#allocation9 + $0x7e0] sm:$0xff]
    %v2798 = vld [vmem:[#allocation9 + $0x838] sm:$0xff]
    %v2799 = vld [vmem:[#allocation9 + $0x890] sm:$0xff]
    %v2800 = vld [vmem:[#allocation9 + $0x8e8] sm:$0xff]
    %v2801 = vld [vmem:[#allocation9 + $0x940] sm:$0xff]
    %v2802 = vld [vmem:[#allocation9 + $0x998] sm:$0xff]
    %v2803 = vld [vmem:[#allocation9 + $0x9f0] sm:$0xff]
    %v2804 = vld [vmem:[#allocation9 + $0xa48] sm:$0xff]
    %v2805 = vld [vmem:[#allocation9 + $0xaa0] sm:$0xff]
    %v2806 = vld [vmem:[#allocation9 + $0xaf8] sm:$0xff]
    %v2807 = vpack.c.bf16 %v2773, %v2773
    %v2808 = vpack.c.bf16 %v2774, %v2774
    %v2841 = vunpack.c.l.b16 %v2775
    %v2842 = vunpack.c.h.b16 %v2775
    %v2843 = vunpack.c.l.b16 %v2776
    %v2844 = vunpack.c.h.b16 %v2776
    %v2845 = vunpack.c.l.b16 %v2777
    %v2846 = vunpack.c.h.b16 %v2777
    %v2847 = vunpack.c.l.b16 %v2778
    %v2848 = vunpack.c.h.b16 %v2778
    %v2849 = vunpack.c.l.b16 %v2779
    %v2850 = vunpack.c.h.b16 %v2779
    %v2851 = vunpack.c.l.b16 %v2780
    %v2852 = vunpack.c.h.b16 %v2780
    %v2853 = vunpack.c.l.b16 %v2781
    %v2854 = vunpack.c.h.b16 %v2781
    %v2855 = vunpack.c.l.b16 %v2782
    %v2856 = vunpack.c.h.b16 %v2782
    %v2857 = vunpack.c.l.b16 %v2783
    %v2858 = vunpack.c.h.b16 %v2783
    %v2859 = vunpack.c.l.b16 %v2784
    %v2860 = vunpack.c.h.b16 %v2784
    %v2861 = vunpack.c.l.b16 %v2785
    %v2862 = vunpack.c.h.b16 %v2785
    %v2863 = vunpack.c.l.b16 %v2786
    %v2864 = vunpack.c.h.b16 %v2786
    %v2865 = vunpack.c.l.b16 %v2787
    %v2866 = vunpack.c.h.b16 %v2787
    %v2867 = vunpack.c.l.b16 %v2788
    %v2868 = vunpack.c.h.b16 %v2788
    %v2869 = vunpack.c.l.b16 %v2789
    %v2870 = vunpack.c.h.b16 %v2789
    %v2871 = vunpack.c.l.b16 %v2790
    %v2872 = vunpack.c.h.b16 %v2790
    %v2873 = vunpack.c.l.b16 %v2791
    %v2874 = vunpack.c.h.b16 %v2791
    %v2875 = vunpack.c.l.b16 %v2792
    %v2876 = vunpack.c.h.b16 %v2792
    %v2877 = vunpack.c.l.b16 %v2793
    %v2878 = vunpack.c.h.b16 %v2793
    %v2879 = vunpack.c.l.b16 %v2794
    %v2880 = vunpack.c.h.b16 %v2794
    %v2881 = vunpack.c.l.b16 %v2795
    %v2882 = vunpack.c.h.b16 %v2795
    %v2883 = vunpack.c.l.b16 %v2796
    %v2884 = vunpack.c.h.b16 %v2796
    %v2885 = vunpack.c.l.b16 %v2797
    %v2886 = vunpack.c.h.b16 %v2797
    %v2887 = vunpack.c.l.b16 %v2798
    %v2888 = vunpack.c.h.b16 %v2798
    %v2889 = vunpack.c.l.b16 %v2799
    %v2890 = vunpack.c.h.b16 %v2799
    %v2891 = vunpack.c.l.b16 %v2800
    %v2892 = vunpack.c.h.b16 %v2800
    %v2893 = vunpack.c.l.b16 %v2801
    %v2894 = vunpack.c.h.b16 %v2801
    %v2895 = vunpack.c.l.b16 %v2802
    %v2896 = vunpack.c.h.b16 %v2802
    %v2897 = vunpack.c.l.b16 %v2803
    %v2898 = vunpack.c.h.b16 %v2803
    %v2899 = vunpack.c.l.b16 %v2804
    %v2900 = vunpack.c.h.b16 %v2804
    %v2901 = vunpack.c.l.b16 %v2805
    %v2902 = vunpack.c.h.b16 %v2805
    %v2903 = vunpack.c.l.b16 %v2806
    %v2904 = vunpack.c.h.b16 %v2806
    %v2905 = vpack.c.b16 %v2843, %v2841
    %v2906 = vpack.c.b16 %v2844, %v2842
    %v2907 = vpack.c.b16 %v2847, %v2845
    %v2908 = vpack.c.b16 %v2848, %v2846
    %v2909 = vpack.c.b16 %v2851, %v2849
    %v2910 = vpack.c.b16 %v2852, %v2850
    %v2911 = vpack.c.b16 %v2855, %v2853
    %v2912 = vpack.c.b16 %v2856, %v2854
    %v2913 = vpack.c.b16 %v2859, %v2857
    %v2914 = vpack.c.b16 %v2860, %v2858
    %v2915 = vpack.c.b16 %v2863, %v2861
    %v2916 = vpack.c.b16 %v2864, %v2862
    %v2917 = vpack.c.b16 %v2867, %v2865
    %v2918 = vpack.c.b16 %v2868, %v2866
    %v2919 = vpack.c.b16 %v2871, %v2869
    %v2920 = vpack.c.b16 %v2872, %v2870
    %v2921 = vpack.c.b16 %v2875, %v2873
    %v2922 = vpack.c.b16 %v2876, %v2874
    %v2923 = vpack.c.b16 %v2879, %v2877
    %v2924 = vpack.c.b16 %v2880, %v2878
    %v2925 = vpack.c.b16 %v2883, %v2881
    %v2926 = vpack.c.b16 %v2884, %v2882
    %v2927 = vpack.c.b16 %v2887, %v2885
    %v2928 = vpack.c.b16 %v2888, %v2886
    %v2929 = vpack.c.b16 %v2891, %v2889
    %v2930 = vpack.c.b16 %v2892, %v2890
    %v2931 = vpack.c.b16 %v2895, %v2893
    %v2932 = vpack.c.b16 %v2896, %v2894
    %v2933 = vpack.c.b16 %v2899, %v2897
    %v2934 = vpack.c.b16 %v2900, %v2898
    %v2935 = vpack.c.b16 %v2903, %v2901
    %v2936 = vpack.c.b16 %v2904, %v2902
    %2969 = vmatpush.bf16.msra.mxu0 %v2919
    %2970 = vmatpush.bf16.msra.mxu0 %v2917
    %2971 = vmatpush.bf16.msra.mxu0 %v2915
    %2972 = vmatpush.bf16.msra.mxu0 %v2913
    %2973 = vmatpush.bf16.msra.mxu0 %v2911
    %2974 = vmatpush.bf16.msra.mxu0 %v2909
    %2975 = vmatpush.bf16.msra.mxu0 %v2907
    %2976 = vmatpush.bf16.msra.mxu0 %v2905
    %2977 = vmatmul.bf16.gmra.mxu0 %v2807
    %v2978 = vpop.f32.mrf.mxu0
    %v2979 = vadd.f32 0.0, %v2978
    %v2980 = vpop.f32.mrf.mxu0
    %2981 = vdwg.mxu0
    %2982 = vmatpush.bf16.msra.mxu0 %v2935
    %2983 = vmatpush.bf16.msra.mxu0 %v2933
    %2984 = vmatpush.bf16.msra.mxu0 %v2931
    %2985 = vmatpush.bf16.msra.mxu0 %v2929
    %2986 = vmatpush.bf16.msra.mxu0 %v2927
    %2987 = vmatpush.bf16.msra.mxu0 %v2925
    %2988 = vmatpush.bf16.msra.mxu0 %v2923
    %2989 = vmatpush.bf16.msra.mxu0 %v2921
    %2990 = vmatmul.bf16.gmra.mxu0 %v2808
    %v2991 = vpop.f32.mrf.mxu0
    %v2992 = vadd.f32 %v2979, %v2991
    %v2993 = vpop.f32.mrf.mxu0
    %2994 = vdwg.mxu0
    %2995 = vmatpush.bf16.msra.mxu0 %v2920
    %2996 = vmatpush.bf16.msra.mxu0 %v2918
    %2997 = vmatpush.bf16.msra.mxu0 %v2916
    %2998 = vmatpush.bf16.msra.mxu0 %v2914
    %2999 = vmatpush.bf16.msra.mxu0 %v2912
    %3000 = vmatpush.bf16.msra.mxu0 %v2910
    %3001 = vmatpush.bf16.msra.mxu0 %v2908
    %3002 = vmatpush.bf16.msra.mxu0 %v2906
    %3003 = vmatmul.bf16.gmra.mxu0 %v2807
    %v3004 = vpop.f32.mrf.mxu0
    %v3005 = vadd.f32 0.0, %v3004
    %v3006 = vpop.f32.mrf.mxu0
    %3007 = vdwg.mxu0
    %3008 = vmatpush.bf16.msra.mxu0 %v2936
    %3009 = vmatpush.bf16.msra.mxu0 %v2934
    %3010 = vmatpush.bf16.msra.mxu0 %v2932
    %3011 = vmatpush.bf16.msra.mxu0 %v2930
    %3012 = vmatpush.bf16.msra.mxu0 %v2928
    %3013 = vmatpush.bf16.msra.mxu0 %v2926
    %3014 = vmatpush.bf16.msra.mxu0 %v2924
    %3015 = vmatpush.bf16.msra.mxu0 %v2922
    %3016 = vmatmul.bf16.gmra.mxu0 %v2808
    %v3017 = vpop.f32.mrf.mxu0
    %v3018 = vadd.f32 %v3005, %v3017
    %v3019 = vpop.f32.mrf.mxu0
    %3020 = vdwg.mxu0
    %v3021 = vld [vmem:[#allocation11 + $0x12] sm:$0x1]
    %v3023 = vperm.slane %v3021, 0
    %v3025 = vadd.f32 %v2992, %v3023
    %v3026 = vld [vmem:[#allocation11 + $0x13] sm:$0x1]
    %v3028 = vperm.slane %v3026, 0
    %v3030 = vadd.f32 %v3018, %v3028
    %v3031 = vsel %vm1751, %v3025, -inf
    %3032 = vmax.xlane.f32.xlu0 %v3031
    %v3033 = vpop.xlane.xlu0 %3032
    %v3034 = vsub.f32 %v3025, %v3033
    %v3035 = vmul.f32 %v3034, 1.442695
    %v3036 = vpow.pop %v3035
    %v3037 = vsel %vm1751, %v3036, 0.0
    %3038 = vadd.xlane.f32.xlu0 %v3037
    %v3039 = vpop.xlane.xlu0 %3038
    %v3040 = vrcp.pop %v3039
    %v3041 = vmul.f32 %v3036, %v3040
    %3042 = vst [vmem:[#allocation12] sm:$0xf] %v1752
    %3043 = vst [vmem:[#allocation12 + $0x4] sm:$0x3] %v3041
    %3045 = vst.sshfl [vmem:[#allocation1] sm:$0xff pattern:$0x73625140] %v3030
    %s3046 = scalar_lea.vmem [#allocation1], 1
    %v3047 = vld [vmem:[%s3046] ss:$4 sm:$0xff]
    %3049 = vst [vmem:[#allocation12 + $0x6] sm:$0x3] %v3047
    // Predicated region
    $region46: #{tpu_custom_call.1} parent=1 // pred_check
      _
    $region47: #{tpu_custom_call.1} parent=1 // pred_check_branch
      %3051 = sbr.rel (0) target = $region49
    $region48: #{tpu_custom_call.1} parent=1 // pred_region
      %3053 = vsyncadd [#allocation5], 0
      %s3055 = sshll.u32 [#allocation12], 4
      %s3056 = int_to_ptr.vmem [resolvable:$true] %s3055
      %s3057 = sshll.u32 %s5, 4
      %s3058 = int_to_ptr.hbm [resolvable:$true] %s3057
      %3060 = dma.vmem_to_hbm [thread:$0]  %s3056, 128, %s3058, [#allocation5]
    $region49: #{tpu_custom_call.1} parent=1 // pred_fallthru
      _
    // Predicated region
    $region50: #{tpu_custom_call.1} parent=1 // pred_check
      _
    $region51: #{tpu_custom_call.1} parent=1 // pred_check_branch
      %3062 = sbr.rel (0) target = $region53
    $region52: #{tpu_custom_call.1} parent=1 // pred_region
      %3064 = dma.done [#allocation5], 128
    $region53: #{tpu_custom_call.1} parent=1 // pred_fallthru
      _
    %3065 = vsyncpa [#allocation4], 1
    %3066 = vsyncpa [#allocation7], 1
    %3067 = vsyncpa [#allocation10], 1
    %3068 = vsyncpa [#allocation5], 1

</llo_original>
